<compile_context>
chip_gen: v5e
topology: v5e:2x2
jax: 0.10.0
libtpu: 0.0.40
codegen_flags: <defaults>
</compile_context>

<pallas_src>
import functools

import jax
import jax.numpy as jnp
from jax.experimental import pallas as pl
from jax.experimental.pallas import tpu as pltpu


# ----------------------------------------------------------------------------
# Fused Pallas kernel
# ----------------------------------------------------------------------------
def _gru_cell(gi_t, h, w_hh, b_hh, H):
    """One PyTorch-convention GRU step, with the input projection precomputed.

    gi_t : [B, 3H]  (= x_t @ W_ih + b_ih, hoisted out of the recurrence)
    h    : [B, H]
    """
    gh = jnp.dot(h, w_hh, preferred_element_type=jnp.float32) + b_hh  # [B, 3H]
    r = jax.nn.sigmoid(gi_t[:, :H] + gh[:, :H])
    z = jax.nn.sigmoid(gi_t[:, H:2 * H] + gh[:, H:2 * H])
    n = jnp.tanh(gi_t[:, 2 * H:] + r * gh[:, 2 * H:])
    return (1.0 - z) * n + z * h


def _fused_forward_kernel(x_ref,
                          wf_ih_ref, wf_hh_ref, bf_ih_ref, bf_hh_ref,
                          wb_ih_ref, wb_hh_ref, bb_ih_ref, bb_hh_ref,
                          wd_ih_ref, wd_hh_ref, bd_ih_ref, bd_hh_ref,
                          w_out_ref, b_out_ref,
                          out_ref,
                          *, t_last, batch):
    """Whole forward pass in one kernel.

    x_ref   : [T*B, F]   time-major flattened input features
    out_ref : [B, T_out, C]
    """
    B = batch
    T = x_ref.shape[0] // B
    H = wf_hh_ref.shape[0]
    D = wd_hh_ref.shape[0]
    T_out = out_ref.shape[1]

    # ---- load every weight/bias exactly once (stays resident in vregs) ----
    wf_ih = wf_ih_ref[...]; wf_hh = wf_hh_ref[...]
    bf_ih = bf_ih_ref[...]; bf_hh = bf_hh_ref[...]
    wb_ih = wb_ih_ref[...]; wb_hh = wb_hh_ref[...]
    bb_ih = bb_ih_ref[...]; bb_hh = bb_hh_ref[...]
    wd_ih = wd_ih_ref[...]; wd_hh = wd_hh_ref[...]
    bd_ih = bd_ih_ref[...]; bd_hh = bd_hh_ref[...]
    w_out = w_out_ref[...]; b_out = b_out_ref[...]

    # ---- encoder: input-to-hidden projections hoisted into batched matmuls ----
    x2 = x_ref[...]                                                    # [T*B, F]
    gi_f = jnp.dot(x2, wf_ih, preferred_element_type=jnp.float32) + bf_ih  # [T*B, 3H]
    gi_b = jnp.dot(x2, wb_ih, preferred_element_type=jnp.float32) + bb_ih  # [T*B, 3H]

    # forward direction: only steps 0 .. t_last are ever consumed (fully unrolled)
    h_f = jnp.zeros((B, H), jnp.float32)
    for t in range(t_last + 1):
        h_f = _gru_cell(gi_f[t * B:(t + 1) * B, :], h_f, wf_hh, bf_hh, H)

    # backward direction: only steps T-1 .. t_last are ever consumed (<= ssf steps)
    h_b = jnp.zeros((B, H), jnp.float32)
    for t in range(T - 1, t_last - 1, -1):
        h_b = _gru_cell(gi_b[t * B:(t + 1) * B, :], h_b, wb_hh, bb_hh, H)

    # last sub-sampled encoder output: [h_fwd(t_last), h_bwd(t_last)]
    enc_last = jnp.concatenate([h_f, h_b], axis=-1)                    # [B, 2H]

    # ---- decoder (no attention): constant input per step -> hoist gi once ----
    gi_d = jnp.dot(enc_last, wd_ih, preferred_element_type=jnp.float32) + bd_ih
    i_r = gi_d[:, :D]
    i_z = gi_d[:, D:2 * D]
    i_n = gi_d[:, 2 * D:]

    h = jnp.zeros((B, D), jnp.float32)
    hs = []
    for _ in range(T_out):                                             # fully unrolled
        gh = jnp.dot(h, wd_hh, preferred_element_type=jnp.float32) + bd_hh
        r = jax.nn.sigmoid(i_r + gh[:, :D])
        z = jax.nn.sigmoid(i_z + gh[:, D:2 * D])
        n = jnp.tanh(i_n + r * gh[:, 2 * D:])
        h = (1.0 - z) * n + z * h
        hs.append(h)

    # ---- classifier: one batched matmul over all decoder steps ----
    h_all = jnp.concatenate(hs, axis=0)                                # [T_out*B, D]
    logits = jnp.dot(h_all, w_out, preferred_element_type=jnp.float32) + b_out

    # write batch-major output directly (no wrapper transpose needed)
    for t in range(T_out):
        out_ref[:, t:t + 1, :] = logits[t * B:(t + 1) * B, :][:, None, :]


# ----------------------------------------------------------------------------
# Wrapper (single pallas_call, no intermediate HBM traffic)
# ----------------------------------------------------------------------------
_VMEM = pl.BlockSpec(memory_space=pltpu.MemorySpace.VMEM)


@functools.partial(jax.jit, static_argnames=("sub_sampling_factor",
                                             "max_out_t_steps", "mode"))
def subsampling_attention_forward(x, params, *, sub_sampling_factor,
                                  max_out_t_steps, mode):
    """x: [B, T, F] -> [B, max_out_t_steps, nb_classes]."""
    if mode != 0:
        # TODO(synk): mode==1 AttentionDecoder internals are not given in the source.
        raise NotImplementedError("Only mode=0 (no attention) is implemented.")

    B, T, F = x.shape
    # Index (in the original time axis) of the last sub-sampled encoder step:
    # encoder_outputs[:, ssf-1::ssf, :][:, -1, :]
    sub_idx = list(range(sub_sampling_factor - 1, T, sub_sampling_factor))
    if not sub_idx:
        raise ValueError("time_steps must be >= sub_sampling_factor")
    t_last = sub_idx[-1]

    C = params["w_out"].shape[1]

    # time-major flatten of the (tiny) input so per-step rows are contiguous
    x_tm = jnp.transpose(x, (1, 0, 2)).reshape(T * B, F)

    kernel = functools.partial(_fused_forward_kernel, t_last=t_last, batch=B)
    return pl.pallas_call(
        kernel,
        out_shape=jax.ShapeDtypeStruct((B, max_out_t_steps, C), jnp.float32),
        in_specs=[_VMEM] * 15,
        out_specs=_VMEM,
    )(x_tm,
      params["wf_ih"], params["wf_hh"], params["bf_ih"], params["bf_hh"],
      params["wb_ih"], params["wb_hh"], params["bb_ih"], params["bb_hh"],
      params["wd_ih"], params["wd_hh"], params["bd_ih"], params["bd_hh"],
      params["w_out"], params["b_out"])


# ----------------------------------------------------------------------------
# Pure-JAX reference (for correctness check)
# ----------------------------------------------------------------------------
def _reference_forward(x, p, *, sub_sampling_factor, max_out_t_steps):
    B, T, _ = x.shape
    H = p["wf_hh"].shape[0]
    D = p["wd_hh"].shape[0]

    def gru_seq(xs, w_ih, w_hh, b_ih, b_hh, hid):
        def step(h, x_t):
            gi = x_t @ w_ih + b_ih
            gh = h @ w_hh + b_hh
            r = jax.nn.sigmoid(gi[:, :hid] + gh[:, :hid])
            z = jax.nn.sigmoid(gi[:, hid:2 * hid] + gh[:, hid:2 * hid])
            n = jnp.tanh(gi[:, 2 * hid:] + r * gh[:, 2 * hid:])
            h_new = (1.0 - z) * n + z * h
            return h_new, h_new
        h0 = jnp.zeros((xs.shape[1], hid), jnp.float32)
        _, hs = jax.lax.scan(step, h0, xs)
        return hs

    x_t = jnp.transpose(x, (1, 0, 2))                                  # [T, B, F]
    hs_f = gru_seq(x_t, p["wf_ih"], p["wf_hh"], p["bf_ih"], p["bf_hh"], H)
    hs_b = gru_seq(x_t[::-1], p["wb_ih"], p["wb_hh"], p["bb_ih"], p["bb_hh"], H)[::-1]
    enc = jnp.transpose(jnp.concatenate([hs_f, hs_b], axis=-1), (1, 0, 2))
    enc_last = enc[:, sub_sampling_factor - 1::sub_sampling_factor, :][:, -1, :]

    def dec_step(h, _):
        gi = enc_last @ p["wd_ih"] + p["bd_ih"]
        gh = h @ p["wd_hh"] + p["bd_hh"]
        r = jax.nn.sigmoid(gi[:, :D] + gh[:, :D])
        z = jax.nn.sigmoid(gi[:, D:2 * D] + gh[:, D:2 * D])
        n = jnp.tanh(gi[:, 2 * D:] + r * gh[:, 2 * D:])
        h_new = (1.0 - z) * n + z * h
        return h_new, h_new @ p["w_out"] + p["b_out"]

    h0 = jnp.zeros((B, D), jnp.float32)
    _, logits = jax.lax.scan(dec_step, h0, None, length=max_out_t_steps)
    return jnp.transpose(logits, (1, 0, 2))                            # [B, T_out, C]


# ----------------------------------------------------------------------------
# Deterministic parameter construction
# ----------------------------------------------------------------------------
def init_params(key, input_dim_encoder, output_dim_encoder,
                output_dim_h_decoder, nb_classes):
    H = output_dim_encoder
    D = output_dim_h_decoder
    keys = jax.random.split(key, 16)
    s = 0.1

    def rnd(k, shape):
        return (s * jax.random.normal(k, shape)).astype(jnp.float32)

    return {
        # encoder forward-direction GRU
        "wf_ih": rnd(keys[0], (input_dim_encoder, 3 * H)),
        "wf_hh": rnd(keys[1], (H, 3 * H)),
        "bf_ih": rnd(keys[2], (1, 3 * H)),
        "bf_hh": rnd(keys[3], (1, 3 * H)),
        # encoder backward-direction GRU
        "wb_ih": rnd(keys[4], (input_dim_encoder, 3 * H)),
        "wb_hh": rnd(keys[5], (H, 3 * H)),
        "bb_ih": rnd(keys[6], (1, 3 * H)),
        "bb_hh": rnd(keys[7], (1, 3 * H)),
        # decoder GRU (input_dim = 2H)
        "wd_ih": rnd(keys[8], (2 * H, 3 * D)),
        "wd_hh": rnd(keys[9], (D, 3 * D)),
        "bd_ih": rnd(keys[10], (1, 3 * D)),
        "bd_hh": rnd(keys[11], (1, 3 * D)),
        # classifier
        "w_out": rnd(keys[12], (D, nb_classes)),
        "b_out": rnd(keys[13], (1, nb_classes)),
    }


# ----------------------------------------------------------------------------
if __name__ == "__main__":
    # module hyper-parameters (small, consistent with the forward signature)
    input_dim_encoder = 8
    hidden_dim_encoder = 16          # TODO(synk): unused in single-layer encoder
    output_dim_encoder = 16
    dropout_p_encoder = 0.25         # inference -> identity
    sub_sampling_factor_encoder = 2
    sub_sampling_mode = 0
    output_dim_h_decoder = 32
    nb_classes = 10
    dropout_p_decoder = 0.25         # inference -> identity
    max_out_t_steps = 4
    mode = 0

    batch_size, time_steps = 2, 16

    key = jax.random.PRNGKey(0)
    k_params, k_x = jax.random.split(key)
    params = init_params(k_params, input_dim_encoder, output_dim_encoder,
                         output_dim_h_decoder, nb_classes)
    x = jax.random.normal(
        k_x, (batch_size, time_steps, input_dim_encoder), dtype=jnp.float32)

    out = subsampling_attention_forward(
        x, params,
        sub_sampling_factor=sub_sampling_factor_encoder,
        max_out_t_steps=max_out_t_steps,
        mode=mode)
    out = jax.block_until_ready(out)

    assert out.shape == (batch_size, max_out_t_steps, nb_classes), \
        "output shape of the network is not of the right shape"
    assert bool(jnp.all(jnp.isfinite(out)))

    ref = _reference_forward(x, params,
                             sub_sampling_factor=sub_sampling_factor_encoder,
                             max_out_t_steps=max_out_t_steps)
    max_err = float(jnp.max(jnp.abs(out - ref)))
    assert max_err < 1e-4, f"kernel mismatch vs reference: {max_err}"

    print("KERNEL_OK")
</pallas_src>

<mosaic_0001>
module attributes {stable_mosaic.version = 11 : i64} {
  func.func @_fused_forward_kernel(%arg0: memref<32x8xf32, #tpu.memory_space<vmem>>, %arg1: memref<8x48xf32, #tpu.memory_space<vmem>>, %arg2: memref<16x48xf32, #tpu.memory_space<vmem>>, %arg3: memref<1x48xf32, #tpu.memory_space<vmem>>, %arg4: memref<1x48xf32, #tpu.memory_space<vmem>>, %arg5: memref<8x48xf32, #tpu.memory_space<vmem>>, %arg6: memref<16x48xf32, #tpu.memory_space<vmem>>, %arg7: memref<1x48xf32, #tpu.memory_space<vmem>>, %arg8: memref<1x48xf32, #tpu.memory_space<vmem>>, %arg9: memref<32x96xf32, #tpu.memory_space<vmem>>, %arg10: memref<32x96xf32, #tpu.memory_space<vmem>>, %arg11: memref<1x96xf32, #tpu.memory_space<vmem>>, %arg12: memref<1x96xf32, #tpu.memory_space<vmem>>, %arg13: memref<32x10xf32, #tpu.memory_space<vmem>>, %arg14: memref<1x10xf32, #tpu.memory_space<vmem>>, %arg15: memref<2x4x10xf32, #tpu.memory_space<vmem>>) attributes {dimension_semantics = [], scalar_prefetch = 0 : i64, scratch_operands = 0 : i64, tpu.core_type = #tpu.core_type<tc>} {
    %c0 = arith.constant 0 : index
    %c0_0 = arith.constant 0 : index
    %0 = vector.load %arg1[%c0, %c0_0] : memref<8x48xf32, #tpu.memory_space<vmem>>, vector<8x48xf32>
    %c0_1 = arith.constant 0 : index
    %c0_2 = arith.constant 0 : index
    %1 = vector.load %arg2[%c0_1, %c0_2] : memref<16x48xf32, #tpu.memory_space<vmem>>, vector<16x48xf32>
    %c0_3 = arith.constant 0 : index
    %c0_4 = arith.constant 0 : index
    %2 = vector.load %arg3[%c0_3, %c0_4] : memref<1x48xf32, #tpu.memory_space<vmem>>, vector<1x48xf32>
    %c0_5 = arith.constant 0 : index
    %c0_6 = arith.constant 0 : index
    %3 = vector.load %arg4[%c0_5, %c0_6] : memref<1x48xf32, #tpu.memory_space<vmem>>, vector<1x48xf32>
    %c0_7 = arith.constant 0 : index
    %c0_8 = arith.constant 0 : index
    %4 = vector.load %arg5[%c0_7, %c0_8] : memref<8x48xf32, #tpu.memory_space<vmem>>, vector<8x48xf32>
    %c0_9 = arith.constant 0 : index
    %c0_10 = arith.constant 0 : index
    %5 = vector.load %arg6[%c0_9, %c0_10] : memref<16x48xf32, #tpu.memory_space<vmem>>, vector<16x48xf32>
    %c0_11 = arith.constant 0 : index
    %c0_12 = arith.constant 0 : index
    %6 = vector.load %arg7[%c0_11, %c0_12] : memref<1x48xf32, #tpu.memory_space<vmem>>, vector<1x48xf32>
    %c0_13 = arith.constant 0 : index
    %c0_14 = arith.constant 0 : index
    %7 = vector.load %arg8[%c0_13, %c0_14] : memref<1x48xf32, #tpu.memory_space<vmem>>, vector<1x48xf32>
    %c0_15 = arith.constant 0 : index
    %c0_16 = arith.constant 0 : index
    %8 = vector.load %arg9[%c0_15, %c0_16] : memref<32x96xf32, #tpu.memory_space<vmem>>, vector<32x96xf32>
    %c0_17 = arith.constant 0 : index
    %c0_18 = arith.constant 0 : index
    %9 = vector.load %arg10[%c0_17, %c0_18] : memref<32x96xf32, #tpu.memory_space<vmem>>, vector<32x96xf32>
    %c0_19 = arith.constant 0 : index
    %c0_20 = arith.constant 0 : index
    %10 = vector.load %arg11[%c0_19, %c0_20] : memref<1x96xf32, #tpu.memory_space<vmem>>, vector<1x96xf32>
    %c0_21 = arith.constant 0 : index
    %c0_22 = arith.constant 0 : index
    %11 = vector.load %arg12[%c0_21, %c0_22] : memref<1x96xf32, #tpu.memory_space<vmem>>, vector<1x96xf32>
    %c0_23 = arith.constant 0 : index
    %c0_24 = arith.constant 0 : index
    %12 = vector.load %arg13[%c0_23, %c0_24] : memref<32x10xf32, #tpu.memory_space<vmem>>, vector<32x10xf32>
    %c0_25 = arith.constant 0 : index
    %c0_26 = arith.constant 0 : index
    %13 = vector.load %arg14[%c0_25, %c0_26] : memref<1x10xf32, #tpu.memory_space<vmem>>, vector<1x10xf32>
    %c0_27 = arith.constant 0 : index
    %c0_28 = arith.constant 0 : index
    %14 = vector.load %arg0[%c0_27, %c0_28] : memref<32x8xf32, #tpu.memory_space<vmem>>, vector<32x8xf32>
    %cst = arith.constant dense<0.000000e+00> : vector<32x48xf32>
    %15 = tpu.matmul %14, %0, %cst {dimension_numbers = #tpu.dot_dimension_numbers<[1], [0], [0], [1], [0, 0, 1, 1], [], []>} : vector<32x8xf32>, vector<8x48xf32>, vector<32x48xf32> -> vector<32x48xf32>
    %16 = vector.broadcast %2 : vector<1x48xf32> to vector<32x48xf32>
    %17 = arith.addf %15, %16 : vector<32x48xf32>
    %cst_29 = arith.constant dense<0.000000e+00> : vector<32x48xf32>
    %18 = tpu.matmul %14, %4, %cst_29 {dimension_numbers = #tpu.dot_dimension_numbers<[1], [0], [0], [1], [0, 0, 1, 1], [], []>} : vector<32x8xf32>, vector<8x48xf32>, vector<32x48xf32> -> vector<32x48xf32>
    %19 = vector.broadcast %6 : vector<1x48xf32> to vector<32x48xf32>
    %20 = arith.addf %18, %19 : vector<32x48xf32>
    %cst_30 = arith.constant 0.000000e+00 : f32
    %21 = vector.broadcast %cst_30 : f32 to vector<2x16xf32>
    %22 = vector.extract_strided_slice %17 {offsets = [0, 0], sizes = [2, 48], strides = [1, 1]} : vector<32x48xf32> to vector<2x48xf32>
    %cst_31 = arith.constant dense<0.000000e+00> : vector<2x48xf32>
    %23 = tpu.matmul %21, %1, %cst_31 {dimension_numbers = #tpu.dot_dimension_numbers<[1], [0], [0], [1], [0, 0, 1, 1], [], []>} : vector<2x16xf32>, vector<16x48xf32>, vector<2x48xf32> -> vector<2x48xf32>
    %24 = vector.broadcast %3 : vector<1x48xf32> to vector<2x48xf32>
    %25 = arith.addf %23, %24 : vector<2x48xf32>
    %26 = vector.extract_strided_slice %22 {offsets = [0, 0], sizes = [2, 16], strides = [1, 1]} : vector<2x48xf32> to vector<2x16xf32>
    %27 = vector.extract_strided_slice %25 {offsets = [0, 0], sizes = [2, 16], strides = [1, 1]} : vector<2x48xf32> to vector<2x16xf32>
    %28 = arith.addf %26, %27 : vector<2x16xf32>
    %29 = arith.negf %28 : vector<2x16xf32>
    %30 = math.exp %29 : vector<2x16xf32>
    %cst_32 = arith.constant 1.000000e+00 : f32
    %31 = vector.broadcast %cst_32 : f32 to vector<2x16xf32>
    %32 = arith.addf %31, %30 : vector<2x16xf32>
    %33 = arith.divf %31, %32 : vector<2x16xf32>
    %34 = vector.extract_strided_slice %22 {offsets = [0, 16], sizes = [2, 16], strides = [1, 1]} : vector<2x48xf32> to vector<2x16xf32>
    %35 = vector.extract_strided_slice %25 {offsets = [0, 16], sizes = [2, 16], strides = [1, 1]} : vector<2x48xf32> to vector<2x16xf32>
    %36 = arith.addf %34, %35 : vector<2x16xf32>
    %37 = arith.negf %36 : vector<2x16xf32>
    %38 = math.exp %37 : vector<2x16xf32>
    %cst_33 = arith.constant 1.000000e+00 : f32
    %39 = vector.broadcast %cst_33 : f32 to vector<2x16xf32>
    %40 = arith.addf %39, %38 : vector<2x16xf32>
    %41 = arith.divf %39, %40 : vector<2x16xf32>
    %42 = vector.extract_strided_slice %22 {offsets = [0, 32], sizes = [2, 16], strides = [1, 1]} : vector<2x48xf32> to vector<2x16xf32>
    %43 = vector.extract_strided_slice %25 {offsets = [0, 32], sizes = [2, 16], strides = [1, 1]} : vector<2x48xf32> to vector<2x16xf32>
    %44 = arith.mulf %33, %43 : vector<2x16xf32>
    %45 = arith.addf %42, %44 : vector<2x16xf32>
    %46 = math.tanh %45 : vector<2x16xf32>
    %cst_34 = arith.constant 1.000000e+00 : f32
    %47 = vector.broadcast %cst_34 : f32 to vector<2x16xf32>
    %48 = arith.subf %47, %41 : vector<2x16xf32>
    %49 = arith.mulf %48, %46 : vector<2x16xf32>
    %50 = arith.mulf %41, %21 : vector<2x16xf32>
    %51 = arith.addf %49, %50 : vector<2x16xf32>
    %52 = vector.extract_strided_slice %17 {offsets = [2, 0], sizes = [2, 48], strides = [1, 1]} : vector<32x48xf32> to vector<2x48xf32>
    %cst_35 = arith.constant dense<0.000000e+00> : vector<2x48xf32>
    %53 = tpu.matmul %51, %1, %cst_35 {dimension_numbers = #tpu.dot_dimension_numbers<[1], [0], [0], [1], [0, 0, 1, 1], [], []>} : vector<2x16xf32>, vector<16x48xf32>, vector<2x48xf32> -> vector<2x48xf32>
    %54 = vector.broadcast %3 : vector<1x48xf32> to vector<2x48xf32>
    %55 = arith.addf %53, %54 : vector<2x48xf32>
    %56 = vector.extract_strided_slice %52 {offsets = [0, 0], sizes = [2, 16], strides = [1, 1]} : vector<2x48xf32> to vector<2x16xf32>
    %57 = vector.extract_strided_slice %55 {offsets = [0, 0], sizes = [2, 16], strides = [1, 1]} : vector<2x48xf32> to vector<2x16xf32>
    %58 = arith.addf %56, %57 : vector<2x16xf32>
    %59 = arith.negf %58 : vector<2x16xf32>
    %60 = math.exp %59 : vector<2x16xf32>
    %cst_36 = arith.constant 1.000000e+00 : f32
    %61 = vector.broadcast %cst_36 : f32 to vector<2x16xf32>
    %62 = arith.addf %61, %60 : vector<2x16xf32>
    %63 = arith.divf %61, %62 : vector<2x16xf32>
    %64 = vector.extract_strided_slice %52 {offsets = [0, 16], sizes = [2, 16], strides = [1, 1]} : vector<2x48xf32> to vector<2x16xf32>
    %65 = vector.extract_strided_slice %55 {offsets = [0, 16], sizes = [2, 16], strides = [1, 1]} : vector<2x48xf32> to vector<2x16xf32>
    %66 = arith.addf %64, %65 : vector<2x16xf32>
    %67 = arith.negf %66 : vector<2x16xf32>
    %68 = math.exp %67 : vector<2x16xf32>
    %cst_37 = arith.constant 1.000000e+00 : f32
    %69 = vector.broadcast %cst_37 : f32 to vector<2x16xf32>
    %70 = arith.addf %69, %68 : vector<2x16xf32>
    %71 = arith.divf %69, %70 : vector<2x16xf32>
    %72 = vector.extract_strided_slice %52 {offsets = [0, 32], sizes = [2, 16], strides = [1, 1]} : vector<2x48xf32> to vector<2x16xf32>
    %73 = vector.extract_strided_slice %55 {offsets = [0, 32], sizes = [2, 16], strides = [1, 1]} : vector<2x48xf32> to vector<2x16xf32>
    %74 = arith.mulf %63, %73 : vector<2x16xf32>
    %75 = arith.addf %72, %74 : vector<2x16xf32>
    %76 = math.tanh %75 : vector<2x16xf32>
    %cst_38 = arith.constant 1.000000e+00 : f32
    %77 = vector.broadcast %cst_38 : f32 to vector<2x16xf32>
    %78 = arith.subf %77, %71 : vector<2x16xf32>
    %79 = arith.mulf %78, %76 : vector<2x16xf32>
    %80 = arith.mulf %71, %51 : vector<2x16xf32>
    %81 = arith.addf %79, %80 : vector<2x16xf32>
    %82 = vector.extract_strided_slice %17 {offsets = [4, 0], sizes = [2, 48], strides = [1, 1]} : vector<32x48xf32> to vector<2x48xf32>
    %cst_39 = arith.constant dense<0.000000e+00> : vector<2x48xf32>
    %83 = tpu.matmul %81, %1, %cst_39 {dimension_numbers = #tpu.dot_dimension_numbers<[1], [0], [0], [1], [0, 0, 1, 1], [], []>} : vector<2x16xf32>, vector<16x48xf32>, vector<2x48xf32> -> vector<2x48xf32>
    %84 = vector.broadcast %3 : vector<1x48xf32> to vector<2x48xf32>
    %85 = arith.addf %83, %84 : vector<2x48xf32>
    %86 = vector.extract_strided_slice %82 {offsets = [0, 0], sizes = [2, 16], strides = [1, 1]} : vector<2x48xf32> to vector<2x16xf32>
    %87 = vector.extract_strided_slice %85 {offsets = [0, 0], sizes = [2, 16], strides = [1, 1]} : vector<2x48xf32> to vector<2x16xf32>
    %88 = arith.addf %86, %87 : vector<2x16xf32>
    %89 = arith.negf %88 : vector<2x16xf32>
    %90 = math.exp %89 : vector<2x16xf32>
    %cst_40 = arith.constant 1.000000e+00 : f32
    %91 = vector.broadcast %cst_40 : f32 to vector<2x16xf32>
    %92 = arith.addf %91, %90 : vector<2x16xf32>
    %93 = arith.divf %91, %92 : vector<2x16xf32>
    %94 = vector.extract_strided_slice %82 {offsets = [0, 16], sizes = [2, 16], strides = [1, 1]} : vector<2x48xf32> to vector<2x16xf32>
    %95 = vector.extract_strided_slice %85 {offsets = [0, 16], sizes = [2, 16], strides = [1, 1]} : vector<2x48xf32> to vector<2x16xf32>
    %96 = arith.addf %94, %95 : vector<2x16xf32>
    %97 = arith.negf %96 : vector<2x16xf32>
    %98 = math.exp %97 : vector<2x16xf32>
    %cst_41 = arith.constant 1.000000e+00 : f32
    %99 = vector.broadcast %cst_41 : f32 to vector<2x16xf32>
    %100 = arith.addf %99, %98 : vector<2x16xf32>
    %101 = arith.divf %99, %100 : vector<2x16xf32>
    %102 = vector.extract_strided_slice %82 {offsets = [0, 32], sizes = [2, 16], strides = [1, 1]} : vector<2x48xf32> to vector<2x16xf32>
    %103 = vector.extract_strided_slice %85 {offsets = [0, 32], sizes = [2, 16], strides = [1, 1]} : vector<2x48xf32> to vector<2x16xf32>
    %104 = arith.mulf %93, %103 : vector<2x16xf32>
    %105 = arith.addf %102, %104 : vector<2x16xf32>
    %106 = math.tanh %105 : vector<2x16xf32>
    %cst_42 = arith.constant 1.000000e+00 : f32
    %107 = vector.broadcast %cst_42 : f32 to vector<2x16xf32>
    %108 = arith.subf %107, %101 : vector<2x16xf32>
    %109 = arith.mulf %108, %106 : vector<2x16xf32>
    %110 = arith.mulf %101, %81 : vector<2x16xf32>
    %111 = arith.addf %109, %110 : vector<2x16xf32>
    %112 = vector.extract_strided_slice %17 {offsets = [6, 0], sizes = [2, 48], strides = [1, 1]} : vector<32x48xf32> to vector<2x48xf32>
    %cst_43 = arith.constant dense<0.000000e+00> : vector<2x48xf32>
    %113 = tpu.matmul %111, %1, %cst_43 {dimension_numbers = #tpu.dot_dimension_numbers<[1], [0], [0], [1], [0, 0, 1, 1], [], []>} : vector<2x16xf32>, vector<16x48xf32>, vector<2x48xf32> -> vector<2x48xf32>
    %114 = vector.broadcast %3 : vector<1x48xf32> to vector<2x48xf32>
    %115 = arith.addf %113, %114 : vector<2x48xf32>
    %116 = vector.extract_strided_slice %112 {offsets = [0, 0], sizes = [2, 16], strides = [1, 1]} : vector<2x48xf32> to vector<2x16xf32>
    %117 = vector.extract_strided_slice %115 {offsets = [0, 0], sizes = [2, 16], strides = [1, 1]} : vector<2x48xf32> to vector<2x16xf32>
    %118 = arith.addf %116, %117 : vector<2x16xf32>
    %119 = arith.negf %118 : vector<2x16xf32>
    %120 = math.exp %119 : vector<2x16xf32>
    %cst_44 = arith.constant 1.000000e+00 : f32
    %121 = vector.broadcast %cst_44 : f32 to vector<2x16xf32>
    %122 = arith.addf %121, %120 : vector<2x16xf32>
    %123 = arith.divf %121, %122 : vector<2x16xf32>
    %124 = vector.extract_strided_slice %112 {offsets = [0, 16], sizes = [2, 16], strides = [1, 1]} : vector<2x48xf32> to vector<2x16xf32>
    %125 = vector.extract_strided_slice %115 {offsets = [0, 16], sizes = [2, 16], strides = [1, 1]} : vector<2x48xf32> to vector<2x16xf32>
    %126 = arith.addf %124, %125 : vector<2x16xf32>
    %127 = arith.negf %126 : vector<2x16xf32>
    %128 = math.exp %127 : vector<2x16xf32>
    %cst_45 = arith.constant 1.000000e+00 : f32
    %129 = vector.broadcast %cst_45 : f32 to vector<2x16xf32>
    %130 = arith.addf %129, %128 : vector<2x16xf32>
    %131 = arith.divf %129, %130 : vector<2x16xf32>
    %132 = vector.extract_strided_slice %112 {offsets = [0, 32], sizes = [2, 16], strides = [1, 1]} : vector<2x48xf32> to vector<2x16xf32>
    %133 = vector.extract_strided_slice %115 {offsets = [0, 32], sizes = [2, 16], strides = [1, 1]} : vector<2x48xf32> to vector<2x16xf32>
    %134 = arith.mulf %123, %133 : vector<2x16xf32>
    %135 = arith.addf %132, %134 : vector<2x16xf32>
    %136 = math.tanh %135 : vector<2x16xf32>
    %cst_46 = arith.constant 1.000000e+00 : f32
    %137 = vector.broadcast %cst_46 : f32 to vector<2x16xf32>
    %138 = arith.subf %137, %131 : vector<2x16xf32>
    %139 = arith.mulf %138, %136 : vector<2x16xf32>
    %140 = arith.mulf %131, %111 : vector<2x16xf32>
    %141 = arith.addf %139, %140 : vector<2x16xf32>
    %142 = vector.extract_strided_slice %17 {offsets = [8, 0], sizes = [2, 48], strides = [1, 1]} : vector<32x48xf32> to vector<2x48xf32>
    %cst_47 = arith.constant dense<0.000000e+00> : vector<2x48xf32>
    %143 = tpu.matmul %141, %1, %cst_47 {dimension_numbers = #tpu.dot_dimension_numbers<[1], [0], [0], [1], [0, 0, 1, 1], [], []>} : vector<2x16xf32>, vector<16x48xf32>, vector<2x48xf32> -> vector<2x48xf32>
    %144 = vector.broadcast %3 : vector<1x48xf32> to vector<2x48xf32>
    %145 = arith.addf %143, %144 : vector<2x48xf32>
    %146 = vector.extract_strided_slice %142 {offsets = [0, 0], sizes = [2, 16], strides = [1, 1]} : vector<2x48xf32> to vector<2x16xf32>
    %147 = vector.extract_strided_slice %145 {offsets = [0, 0], sizes = [2, 16], strides = [1, 1]} : vector<2x48xf32> to vector<2x16xf32>
    %148 = arith.addf %146, %147 : vector<2x16xf32>
    %149 = arith.negf %148 : vector<2x16xf32>
    %150 = math.exp %149 : vector<2x16xf32>
    %cst_48 = arith.constant 1.000000e+00 : f32
    %151 = vector.broadcast %cst_48 : f32 to vector<2x16xf32>
    %152 = arith.addf %151, %150 : vector<2x16xf32>
    %153 = arith.divf %151, %152 : vector<2x16xf32>
    %154 = vector.extract_strided_slice %142 {offsets = [0, 16], sizes = [2, 16], strides = [1, 1]} : vector<2x48xf32> to vector<2x16xf32>
    %155 = vector.extract_strided_slice %145 {offsets = [0, 16], sizes = [2, 16], strides = [1, 1]} : vector<2x48xf32> to vector<2x16xf32>
    %156 = arith.addf %154, %155 : vector<2x16xf32>
    %157 = arith.negf %156 : vector<2x16xf32>
    %158 = math.exp %157 : vector<2x16xf32>
    %cst_49 = arith.constant 1.000000e+00 : f32
    %159 = vector.broadcast %cst_49 : f32 to vector<2x16xf32>
    %160 = arith.addf %159, %158 : vector<2x16xf32>
    %161 = arith.divf %159, %160 : vector<2x16xf32>
    %162 = vector.extract_strided_slice %142 {offsets = [0, 32], sizes = [2, 16], strides = [1, 1]} : vector<2x48xf32> to vector<2x16xf32>
    %163 = vector.extract_strided_slice %145 {offsets = [0, 32], sizes = [2, 16], strides = [1, 1]} : vector<2x48xf32> to vector<2x16xf32>
    %164 = arith.mulf %153, %163 : vector<2x16xf32>
    %165 = arith.addf %162, %164 : vector<2x16xf32>
    %166 = math.tanh %165 : vector<2x16xf32>
    %cst_50 = arith.constant 1.000000e+00 : f32
    %167 = vector.broadcast %cst_50 : f32 to vector<2x16xf32>
    %168 = arith.subf %167, %161 : vector<2x16xf32>
    %169 = arith.mulf %168, %166 : vector<2x16xf32>
    %170 = arith.mulf %161, %141 : vector<2x16xf32>
    %171 = arith.addf %169, %170 : vector<2x16xf32>
    %172 = vector.extract_strided_slice %17 {offsets = [10, 0], sizes = [2, 48], strides = [1, 1]} : vector<32x48xf32> to vector<2x48xf32>
    %cst_51 = arith.constant dense<0.000000e+00> : vector<2x48xf32>
    %173 = tpu.matmul %171, %1, %cst_51 {dimension_numbers = #tpu.dot_dimension_numbers<[1], [0], [0], [1], [0, 0, 1, 1], [], []>} : vector<2x16xf32>, vector<16x48xf32>, vector<2x48xf32> -> vector<2x48xf32>
    %174 = vector.broadcast %3 : vector<1x48xf32> to vector<2x48xf32>
    %175 = arith.addf %173, %174 : vector<2x48xf32>
    %176 = vector.extract_strided_slice %172 {offsets = [0, 0], sizes = [2, 16], strides = [1, 1]} : vector<2x48xf32> to vector<2x16xf32>
    %177 = vector.extract_strided_slice %175 {offsets = [0, 0], sizes = [2, 16], strides = [1, 1]} : vector<2x48xf32> to vector<2x16xf32>
    %178 = arith.addf %176, %177 : vector<2x16xf32>
    %179 = arith.negf %178 : vector<2x16xf32>
    %180 = math.exp %179 : vector<2x16xf32>
    %cst_52 = arith.constant 1.000000e+00 : f32
    %181 = vector.broadcast %cst_52 : f32 to vector<2x16xf32>
    %182 = arith.addf %181, %180 : vector<2x16xf32>
    %183 = arith.divf %181, %182 : vector<2x16xf32>
    %184 = vector.extract_strided_slice %172 {offsets = [0, 16], sizes = [2, 16], strides = [1, 1]} : vector<2x48xf32> to vector<2x16xf32>
    %185 = vector.extract_strided_slice %175 {offsets = [0, 16], sizes = [2, 16], strides = [1, 1]} : vector<2x48xf32> to vector<2x16xf32>
    %186 = arith.addf %184, %185 : vector<2x16xf32>
    %187 = arith.negf %186 : vector<2x16xf32>
    %188 = math.exp %187 : vector<2x16xf32>
    %cst_53 = arith.constant 1.000000e+00 : f32
    %189 = vector.broadcast %cst_53 : f32 to vector<2x16xf32>
    %190 = arith.addf %189, %188 : vector<2x16xf32>
    %191 = arith.divf %189, %190 : vector<2x16xf32>
    %192 = vector.extract_strided_slice %172 {offsets = [0, 32], sizes = [2, 16], strides = [1, 1]} : vector<2x48xf32> to vector<2x16xf32>
    %193 = vector.extract_strided_slice %175 {offsets = [0, 32], sizes = [2, 16], strides = [1, 1]} : vector<2x48xf32> to vector<2x16xf32>
    %194 = arith.mulf %183, %193 : vector<2x16xf32>
    %195 = arith.addf %192, %194 : vector<2x16xf32>
    %196 = math.tanh %195 : vector<2x16xf32>
    %cst_54 = arith.constant 1.000000e+00 : f32
    %197 = vector.broadcast %cst_54 : f32 to vector<2x16xf32>
    %198 = arith.subf %197, %191 : vector<2x16xf32>
    %199 = arith.mulf %198, %196 : vector<2x16xf32>
    %200 = arith.mulf %191, %171 : vector<2x16xf32>
    %201 = arith.addf %199, %200 : vector<2x16xf32>
    %202 = vector.extract_strided_slice %17 {offsets = [12, 0], sizes = [2, 48], strides = [1, 1]} : vector<32x48xf32> to vector<2x48xf32>
    %cst_55 = arith.constant dense<0.000000e+00> : vector<2x48xf32>
    %203 = tpu.matmul %201, %1, %cst_55 {dimension_numbers = #tpu.dot_dimension_numbers<[1], [0], [0], [1], [0, 0, 1, 1], [], []>} : vector<2x16xf32>, vector<16x48xf32>, vector<2x48xf32> -> vector<2x48xf32>
    %204 = vector.broadcast %3 : vector<1x48xf32> to vector<2x48xf32>
    %205 = arith.addf %203, %204 : vector<2x48xf32>
    %206 = vector.extract_strided_slice %202 {offsets = [0, 0], sizes = [2, 16], strides = [1, 1]} : vector<2x48xf32> to vector<2x16xf32>
    %207 = vector.extract_strided_slice %205 {offsets = [0, 0], sizes = [2, 16], strides = [1, 1]} : vector<2x48xf32> to vector<2x16xf32>
    %208 = arith.addf %206, %207 : vector<2x16xf32>
    %209 = arith.negf %208 : vector<2x16xf32>
    %210 = math.exp %209 : vector<2x16xf32>
    %cst_56 = arith.constant 1.000000e+00 : f32
    %211 = vector.broadcast %cst_56 : f32 to vector<2x16xf32>
    %212 = arith.addf %211, %210 : vector<2x16xf32>
    %213 = arith.divf %211, %212 : vector<2x16xf32>
    %214 = vector.extract_strided_slice %202 {offsets = [0, 16], sizes = [2, 16], strides = [1, 1]} : vector<2x48xf32> to vector<2x16xf32>
    %215 = vector.extract_strided_slice %205 {offsets = [0, 16], sizes = [2, 16], strides = [1, 1]} : vector<2x48xf32> to vector<2x16xf32>
    %216 = arith.addf %214, %215 : vector<2x16xf32>
    %217 = arith.negf %216 : vector<2x16xf32>
    %218 = math.exp %217 : vector<2x16xf32>
    %cst_57 = arith.constant 1.000000e+00 : f32
    %219 = vector.broadcast %cst_57 : f32 to vector<2x16xf32>
    %220 = arith.addf %219, %218 : vector<2x16xf32>
    %221 = arith.divf %219, %220 : vector<2x16xf32>
    %222 = vector.extract_strided_slice %202 {offsets = [0, 32], sizes = [2, 16], strides = [1, 1]} : vector<2x48xf32> to vector<2x16xf32>
    %223 = vector.extract_strided_slice %205 {offsets = [0, 32], sizes = [2, 16], strides = [1, 1]} : vector<2x48xf32> to vector<2x16xf32>
    %224 = arith.mulf %213, %223 : vector<2x16xf32>
    %225 = arith.addf %222, %224 : vector<2x16xf32>
    %226 = math.tanh %225 : vector<2x16xf32>
    %cst_58 = arith.constant 1.000000e+00 : f32
    %227 = vector.broadcast %cst_58 : f32 to vector<2x16xf32>
    %228 = arith.subf %227, %221 : vector<2x16xf32>
    %229 = arith.mulf %228, %226 : vector<2x16xf32>
    %230 = arith.mulf %221, %201 : vector<2x16xf32>
    %231 = arith.addf %229, %230 : vector<2x16xf32>
    %232 = vector.extract_strided_slice %17 {offsets = [14, 0], sizes = [2, 48], strides = [1, 1]} : vector<32x48xf32> to vector<2x48xf32>
    %cst_59 = arith.constant dense<0.000000e+00> : vector<2x48xf32>
    %233 = tpu.matmul %231, %1, %cst_59 {dimension_numbers = #tpu.dot_dimension_numbers<[1], [0], [0], [1], [0, 0, 1, 1], [], []>} : vector<2x16xf32>, vector<16x48xf32>, vector<2x48xf32> -> vector<2x48xf32>
    %234 = vector.broadcast %3 : vector<1x48xf32> to vector<2x48xf32>
    %235 = arith.addf %233, %234 : vector<2x48xf32>
    %236 = vector.extract_strided_slice %232 {offsets = [0, 0], sizes = [2, 16], strides = [1, 1]} : vector<2x48xf32> to vector<2x16xf32>
    %237 = vector.extract_strided_slice %235 {offsets = [0, 0], sizes = [2, 16], strides = [1, 1]} : vector<2x48xf32> to vector<2x16xf32>
    %238 = arith.addf %236, %237 : vector<2x16xf32>
    %239 = arith.negf %238 : vector<2x16xf32>
    %240 = math.exp %239 : vector<2x16xf32>
    %cst_60 = arith.constant 1.000000e+00 : f32
    %241 = vector.broadcast %cst_60 : f32 to vector<2x16xf32>
    %242 = arith.addf %241, %240 : vector<2x16xf32>
    %243 = arith.divf %241, %242 : vector<2x16xf32>
    %244 = vector.extract_strided_slice %232 {offsets = [0, 16], sizes = [2, 16], strides = [1, 1]} : vector<2x48xf32> to vector<2x16xf32>
    %245 = vector.extract_strided_slice %235 {offsets = [0, 16], sizes = [2, 16], strides = [1, 1]} : vector<2x48xf32> to vector<2x16xf32>
    %246 = arith.addf %244, %245 : vector<2x16xf32>
    %247 = arith.negf %246 : vector<2x16xf32>
    %248 = math.exp %247 : vector<2x16xf32>
    %cst_61 = arith.constant 1.000000e+00 : f32
    %249 = vector.broadcast %cst_61 : f32 to vector<2x16xf32>
    %250 = arith.addf %249, %248 : vector<2x16xf32>
    %251 = arith.divf %249, %250 : vector<2x16xf32>
    %252 = vector.extract_strided_slice %232 {offsets = [0, 32], sizes = [2, 16], strides = [1, 1]} : vector<2x48xf32> to vector<2x16xf32>
    %253 = vector.extract_strided_slice %235 {offsets = [0, 32], sizes = [2, 16], strides = [1, 1]} : vector<2x48xf32> to vector<2x16xf32>
    %254 = arith.mulf %243, %253 : vector<2x16xf32>
    %255 = arith.addf %252, %254 : vector<2x16xf32>
    %256 = math.tanh %255 : vector<2x16xf32>
    %cst_62 = arith.constant 1.000000e+00 : f32
    %257 = vector.broadcast %cst_62 : f32 to vector<2x16xf32>
    %258 = arith.subf %257, %251 : vector<2x16xf32>
    %259 = arith.mulf %258, %256 : vector<2x16xf32>
    %260 = arith.mulf %251, %231 : vector<2x16xf32>
    %261 = arith.addf %259, %260 : vector<2x16xf32>
    %262 = vector.extract_strided_slice %17 {offsets = [16, 0], sizes = [2, 48], strides = [1, 1]} : vector<32x48xf32> to vector<2x48xf32>
    %cst_63 = arith.constant dense<0.000000e+00> : vector<2x48xf32>
    %263 = tpu.matmul %261, %1, %cst_63 {dimension_numbers = #tpu.dot_dimension_numbers<[1], [0], [0], [1], [0, 0, 1, 1], [], []>} : vector<2x16xf32>, vector<16x48xf32>, vector<2x48xf32> -> vector<2x48xf32>
    %264 = vector.broadcast %3 : vector<1x48xf32> to vector<2x48xf32>
    %265 = arith.addf %263, %264 : vector<2x48xf32>
    %266 = vector.extract_strided_slice %262 {offsets = [0, 0], sizes = [2, 16], strides = [1, 1]} : vector<2x48xf32> to vector<2x16xf32>
    %267 = vector.extract_strided_slice %265 {offsets = [0, 0], sizes = [2, 16], strides = [1, 1]} : vector<2x48xf32> to vector<2x16xf32>
    %268 = arith.addf %266, %267 : vector<2x16xf32>
    %269 = arith.negf %268 : vector<2x16xf32>
    %270 = math.exp %269 : vector<2x16xf32>
    %cst_64 = arith.constant 1.000000e+00 : f32
    %271 = vector.broadcast %cst_64 : f32 to vector<2x16xf32>
    %272 = arith.addf %271, %270 : vector<2x16xf32>
    %273 = arith.divf %271, %272 : vector<2x16xf32>
    %274 = vector.extract_strided_slice %262 {offsets = [0, 16], sizes = [2, 16], strides = [1, 1]} : vector<2x48xf32> to vector<2x16xf32>
    %275 = vector.extract_strided_slice %265 {offsets = [0, 16], sizes = [2, 16], strides = [1, 1]} : vector<2x48xf32> to vector<2x16xf32>
    %276 = arith.addf %274, %275 : vector<2x16xf32>
    %277 = arith.negf %276 : vector<2x16xf32>
    %278 = math.exp %277 : vector<2x16xf32>
    %cst_65 = arith.constant 1.000000e+00 : f32
    %279 = vector.broadcast %cst_65 : f32 to vector<2x16xf32>
    %280 = arith.addf %279, %278 : vector<2x16xf32>
    %281 = arith.divf %279, %280 : vector<2x16xf32>
    %282 = vector.extract_strided_slice %262 {offsets = [0, 32], sizes = [2, 16], strides = [1, 1]} : vector<2x48xf32> to vector<2x16xf32>
    %283 = vector.extract_strided_slice %265 {offsets = [0, 32], sizes = [2, 16], strides = [1, 1]} : vector<2x48xf32> to vector<2x16xf32>
    %284 = arith.mulf %273, %283 : vector<2x16xf32>
    %285 = arith.addf %282, %284 : vector<2x16xf32>
    %286 = math.tanh %285 : vector<2x16xf32>
    %cst_66 = arith.constant 1.000000e+00 : f32
    %287 = vector.broadcast %cst_66 : f32 to vector<2x16xf32>
    %288 = arith.subf %287, %281 : vector<2x16xf32>
    %289 = arith.mulf %288, %286 : vector<2x16xf32>
    %290 = arith.mulf %281, %261 : vector<2x16xf32>
    %291 = arith.addf %289, %290 : vector<2x16xf32>
    %292 = vector.extract_strided_slice %17 {offsets = [18, 0], sizes = [2, 48], strides = [1, 1]} : vector<32x48xf32> to vector<2x48xf32>
    %cst_67 = arith.constant dense<0.000000e+00> : vector<2x48xf32>
    %293 = tpu.matmul %291, %1, %cst_67 {dimension_numbers = #tpu.dot_dimension_numbers<[1], [0], [0], [1], [0, 0, 1, 1], [], []>} : vector<2x16xf32>, vector<16x48xf32>, vector<2x48xf32> -> vector<2x48xf32>
    %294 = vector.broadcast %3 : vector<1x48xf32> to vector<2x48xf32>
    %295 = arith.addf %293, %294 : vector<2x48xf32>
    %296 = vector.extract_strided_slice %292 {offsets = [0, 0], sizes = [2, 16], strides = [1, 1]} : vector<2x48xf32> to vector<2x16xf32>
    %297 = vector.extract_strided_slice %295 {offsets = [0, 0], sizes = [2, 16], strides = [1, 1]} : vector<2x48xf32> to vector<2x16xf32>
    %298 = arith.addf %296, %297 : vector<2x16xf32>
    %299 = arith.negf %298 : vector<2x16xf32>
    %300 = math.exp %299 : vector<2x16xf32>
    %cst_68 = arith.constant 1.000000e+00 : f32
    %301 = vector.broadcast %cst_68 : f32 to vector<2x16xf32>
    %302 = arith.addf %301, %300 : vector<2x16xf32>
    %303 = arith.divf %301, %302 : vector<2x16xf32>
    %304 = vector.extract_strided_slice %292 {offsets = [0, 16], sizes = [2, 16], strides = [1, 1]} : vector<2x48xf32> to vector<2x16xf32>
    %305 = vector.extract_strided_slice %295 {offsets = [0, 16], sizes = [2, 16], strides = [1, 1]} : vector<2x48xf32> to vector<2x16xf32>
    %306 = arith.addf %304, %305 : vector<2x16xf32>
    %307 = arith.negf %306 : vector<2x16xf32>
    %308 = math.exp %307 : vector<2x16xf32>
    %cst_69 = arith.constant 1.000000e+00 : f32
    %309 = vector.broadcast %cst_69 : f32 to vector<2x16xf32>
    %310 = arith.addf %309, %308 : vector<2x16xf32>
    %311 = arith.divf %309, %310 : vector<2x16xf32>
    %312 = vector.extract_strided_slice %292 {offsets = [0, 32], sizes = [2, 16], strides = [1, 1]} : vector<2x48xf32> to vector<2x16xf32>
    %313 = vector.extract_strided_slice %295 {offsets = [0, 32], sizes = [2, 16], strides = [1, 1]} : vector<2x48xf32> to vector<2x16xf32>
    %314 = arith.mulf %303, %313 : vector<2x16xf32>
    %315 = arith.addf %312, %314 : vector<2x16xf32>
    %316 = math.tanh %315 : vector<2x16xf32>
    %cst_70 = arith.constant 1.000000e+00 : f32
    %317 = vector.broadcast %cst_70 : f32 to vector<2x16xf32>
    %318 = arith.subf %317, %311 : vector<2x16xf32>
    %319 = arith.mulf %318, %316 : vector<2x16xf32>
    %320 = arith.mulf %311, %291 : vector<2x16xf32>
    %321 = arith.addf %319, %320 : vector<2x16xf32>
    %322 = vector.extract_strided_slice %17 {offsets = [20, 0], sizes = [2, 48], strides = [1, 1]} : vector<32x48xf32> to vector<2x48xf32>
    %cst_71 = arith.constant dense<0.000000e+00> : vector<2x48xf32>
    %323 = tpu.matmul %321, %1, %cst_71 {dimension_numbers = #tpu.dot_dimension_numbers<[1], [0], [0], [1], [0, 0, 1, 1], [], []>} : vector<2x16xf32>, vector<16x48xf32>, vector<2x48xf32> -> vector<2x48xf32>
    %324 = vector.broadcast %3 : vector<1x48xf32> to vector<2x48xf32>
    %325 = arith.addf %323, %324 : vector<2x48xf32>
    %326 = vector.extract_strided_slice %322 {offsets = [0, 0], sizes = [2, 16], strides = [1, 1]} : vector<2x48xf32> to vector<2x16xf32>
    %327 = vector.extract_strided_slice %325 {offsets = [0, 0], sizes = [2, 16], strides = [1, 1]} : vector<2x48xf32> to vector<2x16xf32>
    %328 = arith.addf %326, %327 : vector<2x16xf32>
    %329 = arith.negf %328 : vector<2x16xf32>
    %330 = math.exp %329 : vector<2x16xf32>
    %cst_72 = arith.constant 1.000000e+00 : f32
    %331 = vector.broadcast %cst_72 : f32 to vector<2x16xf32>
    %332 = arith.addf %331, %330 : vector<2x16xf32>
    %333 = arith.divf %331, %332 : vector<2x16xf32>
    %334 = vector.extract_strided_slice %322 {offsets = [0, 16], sizes = [2, 16], strides = [1, 1]} : vector<2x48xf32> to vector<2x16xf32>
    %335 = vector.extract_strided_slice %325 {offsets = [0, 16], sizes = [2, 16], strides = [1, 1]} : vector<2x48xf32> to vector<2x16xf32>
    %336 = arith.addf %334, %335 : vector<2x16xf32>
    %337 = arith.negf %336 : vector<2x16xf32>
    %338 = math.exp %337 : vector<2x16xf32>
    %cst_73 = arith.constant 1.000000e+00 : f32
    %339 = vector.broadcast %cst_73 : f32 to vector<2x16xf32>
    %340 = arith.addf %339, %338 : vector<2x16xf32>
    %341 = arith.divf %339, %340 : vector<2x16xf32>
    %342 = vector.extract_strided_slice %322 {offsets = [0, 32], sizes = [2, 16], strides = [1, 1]} : vector<2x48xf32> to vector<2x16xf32>
    %343 = vector.extract_strided_slice %325 {offsets = [0, 32], sizes = [2, 16], strides = [1, 1]} : vector<2x48xf32> to vector<2x16xf32>
    %344 = arith.mulf %333, %343 : vector<2x16xf32>
    %345 = arith.addf %342, %344 : vector<2x16xf32>
    %346 = math.tanh %345 : vector<2x16xf32>
    %cst_74 = arith.constant 1.000000e+00 : f32
    %347 = vector.broadcast %cst_74 : f32 to vector<2x16xf32>
    %348 = arith.subf %347, %341 : vector<2x16xf32>
    %349 = arith.mulf %348, %346 : vector<2x16xf32>
    %350 = arith.mulf %341, %321 : vector<2x16xf32>
    %351 = arith.addf %349, %350 : vector<2x16xf32>
    %352 = vector.extract_strided_slice %17 {offsets = [22, 0], sizes = [2, 48], strides = [1, 1]} : vector<32x48xf32> to vector<2x48xf32>
    %cst_75 = arith.constant dense<0.000000e+00> : vector<2x48xf32>
    %353 = tpu.matmul %351, %1, %cst_75 {dimension_numbers = #tpu.dot_dimension_numbers<[1], [0], [0], [1], [0, 0, 1, 1], [], []>} : vector<2x16xf32>, vector<16x48xf32>, vector<2x48xf32> -> vector<2x48xf32>
    %354 = vector.broadcast %3 : vector<1x48xf32> to vector<2x48xf32>
    %355 = arith.addf %353, %354 : vector<2x48xf32>
    %356 = vector.extract_strided_slice %352 {offsets = [0, 0], sizes = [2, 16], strides = [1, 1]} : vector<2x48xf32> to vector<2x16xf32>
    %357 = vector.extract_strided_slice %355 {offsets = [0, 0], sizes = [2, 16], strides = [1, 1]} : vector<2x48xf32> to vector<2x16xf32>
    %358 = arith.addf %356, %357 : vector<2x16xf32>
    %359 = arith.negf %358 : vector<2x16xf32>
    %360 = math.exp %359 : vector<2x16xf32>
    %cst_76 = arith.constant 1.000000e+00 : f32
    %361 = vector.broadcast %cst_76 : f32 to vector<2x16xf32>
    %362 = arith.addf %361, %360 : vector<2x16xf32>
    %363 = arith.divf %361, %362 : vector<2x16xf32>
    %364 = vector.extract_strided_slice %352 {offsets = [0, 16], sizes = [2, 16], strides = [1, 1]} : vector<2x48xf32> to vector<2x16xf32>
    %365 = vector.extract_strided_slice %355 {offsets = [0, 16], sizes = [2, 16], strides = [1, 1]} : vector<2x48xf32> to vector<2x16xf32>
    %366 = arith.addf %364, %365 : vector<2x16xf32>
    %367 = arith.negf %366 : vector<2x16xf32>
    %368 = math.exp %367 : vector<2x16xf32>
    %cst_77 = arith.constant 1.000000e+00 : f32
    %369 = vector.broadcast %cst_77 : f32 to vector<2x16xf32>
    %370 = arith.addf %369, %368 : vector<2x16xf32>
    %371 = arith.divf %369, %370 : vector<2x16xf32>
    %372 = vector.extract_strided_slice %352 {offsets = [0, 32], sizes = [2, 16], strides = [1, 1]} : vector<2x48xf32> to vector<2x16xf32>
    %373 = vector.extract_strided_slice %355 {offsets = [0, 32], sizes = [2, 16], strides = [1, 1]} : vector<2x48xf32> to vector<2x16xf32>
    %374 = arith.mulf %363, %373 : vector<2x16xf32>
    %375 = arith.addf %372, %374 : vector<2x16xf32>
    %376 = math.tanh %375 : vector<2x16xf32>
    %cst_78 = arith.constant 1.000000e+00 : f32
    %377 = vector.broadcast %cst_78 : f32 to vector<2x16xf32>
    %378 = arith.subf %377, %371 : vector<2x16xf32>
    %379 = arith.mulf %378, %376 : vector<2x16xf32>
    %380 = arith.mulf %371, %351 : vector<2x16xf32>
    %381 = arith.addf %379, %380 : vector<2x16xf32>
    %382 = vector.extract_strided_slice %17 {offsets = [24, 0], sizes = [2, 48], strides = [1, 1]} : vector<32x48xf32> to vector<2x48xf32>
    %cst_79 = arith.constant dense<0.000000e+00> : vector<2x48xf32>
    %383 = tpu.matmul %381, %1, %cst_79 {dimension_numbers = #tpu.dot_dimension_numbers<[1], [0], [0], [1], [0, 0, 1, 1], [], []>} : vector<2x16xf32>, vector<16x48xf32>, vector<2x48xf32> -> vector<2x48xf32>
    %384 = vector.broadcast %3 : vector<1x48xf32> to vector<2x48xf32>
    %385 = arith.addf %383, %384 : vector<2x48xf32>
    %386 = vector.extract_strided_slice %382 {offsets = [0, 0], sizes = [2, 16], strides = [1, 1]} : vector<2x48xf32> to vector<2x16xf32>
    %387 = vector.extract_strided_slice %385 {offsets = [0, 0], sizes = [2, 16], strides = [1, 1]} : vector<2x48xf32> to vector<2x16xf32>
    %388 = arith.addf %386, %387 : vector<2x16xf32>
    %389 = arith.negf %388 : vector<2x16xf32>
    %390 = math.exp %389 : vector<2x16xf32>
    %cst_80 = arith.constant 1.000000e+00 : f32
    %391 = vector.broadcast %cst_80 : f32 to vector<2x16xf32>
    %392 = arith.addf %391, %390 : vector<2x16xf32>
    %393 = arith.divf %391, %392 : vector<2x16xf32>
    %394 = vector.extract_strided_slice %382 {offsets = [0, 16], sizes = [2, 16], strides = [1, 1]} : vector<2x48xf32> to vector<2x16xf32>
    %395 = vector.extract_strided_slice %385 {offsets = [0, 16], sizes = [2, 16], strides = [1, 1]} : vector<2x48xf32> to vector<2x16xf32>
    %396 = arith.addf %394, %395 : vector<2x16xf32>
    %397 = arith.negf %396 : vector<2x16xf32>
    %398 = math.exp %397 : vector<2x16xf32>
    %cst_81 = arith.constant 1.000000e+00 : f32
    %399 = vector.broadcast %cst_81 : f32 to vector<2x16xf32>
    %400 = arith.addf %399, %398 : vector<2x16xf32>
    %401 = arith.divf %399, %400 : vector<2x16xf32>
    %402 = vector.extract_strided_slice %382 {offsets = [0, 32], sizes = [2, 16], strides = [1, 1]} : vector<2x48xf32> to vector<2x16xf32>
    %403 = vector.extract_strided_slice %385 {offsets = [0, 32], sizes = [2, 16], strides = [1, 1]} : vector<2x48xf32> to vector<2x16xf32>
    %404 = arith.mulf %393, %403 : vector<2x16xf32>
    %405 = arith.addf %402, %404 : vector<2x16xf32>
    %406 = math.tanh %405 : vector<2x16xf32>
    %cst_82 = arith.constant 1.000000e+00 : f32
    %407 = vector.broadcast %cst_82 : f32 to vector<2x16xf32>
    %408 = arith.subf %407, %401 : vector<2x16xf32>
    %409 = arith.mulf %408, %406 : vector<2x16xf32>
    %410 = arith.mulf %401, %381 : vector<2x16xf32>
    %411 = arith.addf %409, %410 : vector<2x16xf32>
    %412 = vector.extract_strided_slice %17 {offsets = [26, 0], sizes = [2, 48], strides = [1, 1]} : vector<32x48xf32> to vector<2x48xf32>
    %cst_83 = arith.constant dense<0.000000e+00> : vector<2x48xf32>
    %413 = tpu.matmul %411, %1, %cst_83 {dimension_numbers = #tpu.dot_dimension_numbers<[1], [0], [0], [1], [0, 0, 1, 1], [], []>} : vector<2x16xf32>, vector<16x48xf32>, vector<2x48xf32> -> vector<2x48xf32>
    %414 = vector.broadcast %3 : vector<1x48xf32> to vector<2x48xf32>
    %415 = arith.addf %413, %414 : vector<2x48xf32>
    %416 = vector.extract_strided_slice %412 {offsets = [0, 0], sizes = [2, 16], strides = [1, 1]} : vector<2x48xf32> to vector<2x16xf32>
    %417 = vector.extract_strided_slice %415 {offsets = [0, 0], sizes = [2, 16], strides = [1, 1]} : vector<2x48xf32> to vector<2x16xf32>
    %418 = arith.addf %416, %417 : vector<2x16xf32>
    %419 = arith.negf %418 : vector<2x16xf32>
    %420 = math.exp %419 : vector<2x16xf32>
    %cst_84 = arith.constant 1.000000e+00 : f32
    %421 = vector.broadcast %cst_84 : f32 to vector<2x16xf32>
    %422 = arith.addf %421, %420 : vector<2x16xf32>
    %423 = arith.divf %421, %422 : vector<2x16xf32>
    %424 = vector.extract_strided_slice %412 {offsets = [0, 16], sizes = [2, 16], strides = [1, 1]} : vector<2x48xf32> to vector<2x16xf32>
    %425 = vector.extract_strided_slice %415 {offsets = [0, 16], sizes = [2, 16], strides = [1, 1]} : vector<2x48xf32> to vector<2x16xf32>
    %426 = arith.addf %424, %425 : vector<2x16xf32>
    %427 = arith.negf %426 : vector<2x16xf32>
    %428 = math.exp %427 : vector<2x16xf32>
    %cst_85 = arith.constant 1.000000e+00 : f32
    %429 = vector.broadcast %cst_85 : f32 to vector<2x16xf32>
    %430 = arith.addf %429, %428 : vector<2x16xf32>
    %431 = arith.divf %429, %430 : vector<2x16xf32>
    %432 = vector.extract_strided_slice %412 {offsets = [0, 32], sizes = [2, 16], strides = [1, 1]} : vector<2x48xf32> to vector<2x16xf32>
    %433 = vector.extract_strided_slice %415 {offsets = [0, 32], sizes = [2, 16], strides = [1, 1]} : vector<2x48xf32> to vector<2x16xf32>
    %434 = arith.mulf %423, %433 : vector<2x16xf32>
    %435 = arith.addf %432, %434 : vector<2x16xf32>
    %436 = math.tanh %435 : vector<2x16xf32>
    %cst_86 = arith.constant 1.000000e+00 : f32
    %437 = vector.broadcast %cst_86 : f32 to vector<2x16xf32>
    %438 = arith.subf %437, %431 : vector<2x16xf32>
    %439 = arith.mulf %438, %436 : vector<2x16xf32>
    %440 = arith.mulf %431, %411 : vector<2x16xf32>
    %441 = arith.addf %439, %440 : vector<2x16xf32>
    %442 = vector.extract_strided_slice %17 {offsets = [28, 0], sizes = [2, 48], strides = [1, 1]} : vector<32x48xf32> to vector<2x48xf32>
    %cst_87 = arith.constant dense<0.000000e+00> : vector<2x48xf32>
    %443 = tpu.matmul %441, %1, %cst_87 {dimension_numbers = #tpu.dot_dimension_numbers<[1], [0], [0], [1], [0, 0, 1, 1], [], []>} : vector<2x16xf32>, vector<16x48xf32>, vector<2x48xf32> -> vector<2x48xf32>
    %444 = vector.broadcast %3 : vector<1x48xf32> to vector<2x48xf32>
    %445 = arith.addf %443, %444 : vector<2x48xf32>
    %446 = vector.extract_strided_slice %442 {offsets = [0, 0], sizes = [2, 16], strides = [1, 1]} : vector<2x48xf32> to vector<2x16xf32>
    %447 = vector.extract_strided_slice %445 {offsets = [0, 0], sizes = [2, 16], strides = [1, 1]} : vector<2x48xf32> to vector<2x16xf32>
    %448 = arith.addf %446, %447 : vector<2x16xf32>
    %449 = arith.negf %448 : vector<2x16xf32>
    %450 = math.exp %449 : vector<2x16xf32>
    %cst_88 = arith.constant 1.000000e+00 : f32
    %451 = vector.broadcast %cst_88 : f32 to vector<2x16xf32>
    %452 = arith.addf %451, %450 : vector<2x16xf32>
    %453 = arith.divf %451, %452 : vector<2x16xf32>
    %454 = vector.extract_strided_slice %442 {offsets = [0, 16], sizes = [2, 16], strides = [1, 1]} : vector<2x48xf32> to vector<2x16xf32>
    %455 = vector.extract_strided_slice %445 {offsets = [0, 16], sizes = [2, 16], strides = [1, 1]} : vector<2x48xf32> to vector<2x16xf32>
    %456 = arith.addf %454, %455 : vector<2x16xf32>
    %457 = arith.negf %456 : vector<2x16xf32>
    %458 = math.exp %457 : vector<2x16xf32>
    %cst_89 = arith.constant 1.000000e+00 : f32
    %459 = vector.broadcast %cst_89 : f32 to vector<2x16xf32>
    %460 = arith.addf %459, %458 : vector<2x16xf32>
    %461 = arith.divf %459, %460 : vector<2x16xf32>
    %462 = vector.extract_strided_slice %442 {offsets = [0, 32], sizes = [2, 16], strides = [1, 1]} : vector<2x48xf32> to vector<2x16xf32>
    %463 = vector.extract_strided_slice %445 {offsets = [0, 32], sizes = [2, 16], strides = [1, 1]} : vector<2x48xf32> to vector<2x16xf32>
    %464 = arith.mulf %453, %463 : vector<2x16xf32>
    %465 = arith.addf %462, %464 : vector<2x16xf32>
    %466 = math.tanh %465 : vector<2x16xf32>
    %cst_90 = arith.constant 1.000000e+00 : f32
    %467 = vector.broadcast %cst_90 : f32 to vector<2x16xf32>
    %468 = arith.subf %467, %461 : vector<2x16xf32>
    %469 = arith.mulf %468, %466 : vector<2x16xf32>
    %470 = arith.mulf %461, %441 : vector<2x16xf32>
    %471 = arith.addf %469, %470 : vector<2x16xf32>
    %472 = vector.extract_strided_slice %17 {offsets = [30, 0], sizes = [2, 48], strides = [1, 1]} : vector<32x48xf32> to vector<2x48xf32>
    %cst_91 = arith.constant dense<0.000000e+00> : vector<2x48xf32>
    %473 = tpu.matmul %471, %1, %cst_91 {dimension_numbers = #tpu.dot_dimension_numbers<[1], [0], [0], [1], [0, 0, 1, 1], [], []>} : vector<2x16xf32>, vector<16x48xf32>, vector<2x48xf32> -> vector<2x48xf32>
    %474 = vector.broadcast %3 : vector<1x48xf32> to vector<2x48xf32>
    %475 = arith.addf %473, %474 : vector<2x48xf32>
    %476 = vector.extract_strided_slice %472 {offsets = [0, 0], sizes = [2, 16], strides = [1, 1]} : vector<2x48xf32> to vector<2x16xf32>
    %477 = vector.extract_strided_slice %475 {offsets = [0, 0], sizes = [2, 16], strides = [1, 1]} : vector<2x48xf32> to vector<2x16xf32>
    %478 = arith.addf %476, %477 : vector<2x16xf32>
    %479 = arith.negf %478 : vector<2x16xf32>
    %480 = math.exp %479 : vector<2x16xf32>
    %cst_92 = arith.constant 1.000000e+00 : f32
    %481 = vector.broadcast %cst_92 : f32 to vector<2x16xf32>
    %482 = arith.addf %481, %480 : vector<2x16xf32>
    %483 = arith.divf %481, %482 : vector<2x16xf32>
    %484 = vector.extract_strided_slice %472 {offsets = [0, 16], sizes = [2, 16], strides = [1, 1]} : vector<2x48xf32> to vector<2x16xf32>
    %485 = vector.extract_strided_slice %475 {offsets = [0, 16], sizes = [2, 16], strides = [1, 1]} : vector<2x48xf32> to vector<2x16xf32>
    %486 = arith.addf %484, %485 : vector<2x16xf32>
    %487 = arith.negf %486 : vector<2x16xf32>
    %488 = math.exp %487 : vector<2x16xf32>
    %cst_93 = arith.constant 1.000000e+00 : f32
    %489 = vector.broadcast %cst_93 : f32 to vector<2x16xf32>
    %490 = arith.addf %489, %488 : vector<2x16xf32>
    %491 = arith.divf %489, %490 : vector<2x16xf32>
    %492 = vector.extract_strided_slice %472 {offsets = [0, 32], sizes = [2, 16], strides = [1, 1]} : vector<2x48xf32> to vector<2x16xf32>
    %493 = vector.extract_strided_slice %475 {offsets = [0, 32], sizes = [2, 16], strides = [1, 1]} : vector<2x48xf32> to vector<2x16xf32>
    %494 = arith.mulf %483, %493 : vector<2x16xf32>
    %495 = arith.addf %492, %494 : vector<2x16xf32>
    %496 = math.tanh %495 : vector<2x16xf32>
    %cst_94 = arith.constant 1.000000e+00 : f32
    %497 = vector.broadcast %cst_94 : f32 to vector<2x16xf32>
    %498 = arith.subf %497, %491 : vector<2x16xf32>
    %499 = arith.mulf %498, %496 : vector<2x16xf32>
    %500 = arith.mulf %491, %471 : vector<2x16xf32>
    %501 = arith.addf %499, %500 : vector<2x16xf32>
    %cst_95 = arith.constant 0.000000e+00 : f32
    %502 = vector.broadcast %cst_95 : f32 to vector<2x16xf32>
    %503 = vector.extract_strided_slice %20 {offsets = [30, 0], sizes = [2, 48], strides = [1, 1]} : vector<32x48xf32> to vector<2x48xf32>
    %cst_96 = arith.constant dense<0.000000e+00> : vector<2x48xf32>
    %504 = tpu.matmul %502, %5, %cst_96 {dimension_numbers = #tpu.dot_dimension_numbers<[1], [0], [0], [1], [0, 0, 1, 1], [], []>} : vector<2x16xf32>, vector<16x48xf32>, vector<2x48xf32> -> vector<2x48xf32>
    %505 = vector.broadcast %7 : vector<1x48xf32> to vector<2x48xf32>
    %506 = arith.addf %504, %505 : vector<2x48xf32>
    %507 = vector.extract_strided_slice %503 {offsets = [0, 0], sizes = [2, 16], strides = [1, 1]} : vector<2x48xf32> to vector<2x16xf32>
    %508 = vector.extract_strided_slice %506 {offsets = [0, 0], sizes = [2, 16], strides = [1, 1]} : vector<2x48xf32> to vector<2x16xf32>
    %509 = arith.addf %507, %508 : vector<2x16xf32>
    %510 = arith.negf %509 : vector<2x16xf32>
    %511 = math.exp %510 : vector<2x16xf32>
    %cst_97 = arith.constant 1.000000e+00 : f32
    %512 = vector.broadcast %cst_97 : f32 to vector<2x16xf32>
    %513 = arith.addf %512, %511 : vector<2x16xf32>
    %514 = arith.divf %512, %513 : vector<2x16xf32>
    %515 = vector.extract_strided_slice %503 {offsets = [0, 16], sizes = [2, 16], strides = [1, 1]} : vector<2x48xf32> to vector<2x16xf32>
    %516 = vector.extract_strided_slice %506 {offsets = [0, 16], sizes = [2, 16], strides = [1, 1]} : vector<2x48xf32> to vector<2x16xf32>
    %517 = arith.addf %515, %516 : vector<2x16xf32>
    %518 = arith.negf %517 : vector<2x16xf32>
    %519 = math.exp %518 : vector<2x16xf32>
    %cst_98 = arith.constant 1.000000e+00 : f32
    %520 = vector.broadcast %cst_98 : f32 to vector<2x16xf32>
    %521 = arith.addf %520, %519 : vector<2x16xf32>
    %522 = arith.divf %520, %521 : vector<2x16xf32>
    %523 = vector.extract_strided_slice %503 {offsets = [0, 32], sizes = [2, 16], strides = [1, 1]} : vector<2x48xf32> to vector<2x16xf32>
    %524 = vector.extract_strided_slice %506 {offsets = [0, 32], sizes = [2, 16], strides = [1, 1]} : vector<2x48xf32> to vector<2x16xf32>
    %525 = arith.mulf %514, %524 : vector<2x16xf32>
    %526 = arith.addf %523, %525 : vector<2x16xf32>
    %527 = math.tanh %526 : vector<2x16xf32>
    %cst_99 = arith.constant 1.000000e+00 : f32
    %528 = vector.broadcast %cst_99 : f32 to vector<2x16xf32>
    %529 = arith.subf %528, %522 : vector<2x16xf32>
    %530 = arith.mulf %529, %527 : vector<2x16xf32>
    %531 = arith.mulf %522, %502 : vector<2x16xf32>
    %532 = arith.addf %530, %531 : vector<2x16xf32>
    %533 = tpu.concatenate %501, %532 in 1 : vector<2x16xf32>, vector<2x16xf32> -> vector<2x32xf32>
    %cst_100 = arith.constant dense<0.000000e+00> : vector<2x96xf32>
    %534 = tpu.matmul %533, %8, %cst_100 {dimension_numbers = #tpu.dot_dimension_numbers<[1], [0], [0], [1], [0, 0, 1, 1], [], []>} : vector<2x32xf32>, vector<32x96xf32>, vector<2x96xf32> -> vector<2x96xf32>
    %535 = vector.broadcast %10 : vector<1x96xf32> to vector<2x96xf32>
    %536 = arith.addf %534, %535 : vector<2x96xf32>
    %537 = vector.extract_strided_slice %536 {offsets = [0, 0], sizes = [2, 32], strides = [1, 1]} : vector<2x96xf32> to vector<2x32xf32>
    %538 = vector.extract_strided_slice %536 {offsets = [0, 32], sizes = [2, 32], strides = [1, 1]} : vector<2x96xf32> to vector<2x32xf32>
    %539 = vector.extract_strided_slice %536 {offsets = [0, 64], sizes = [2, 32], strides = [1, 1]} : vector<2x96xf32> to vector<2x32xf32>
    %cst_101 = arith.constant 0.000000e+00 : f32
    %540 = vector.broadcast %cst_101 : f32 to vector<2x32xf32>
    %cst_102 = arith.constant dense<0.000000e+00> : vector<2x96xf32>
    %541 = tpu.matmul %540, %9, %cst_102 {dimension_numbers = #tpu.dot_dimension_numbers<[1], [0], [0], [1], [0, 0, 1, 1], [], []>} : vector<2x32xf32>, vector<32x96xf32>, vector<2x96xf32> -> vector<2x96xf32>
    %542 = vector.broadcast %11 : vector<1x96xf32> to vector<2x96xf32>
    %543 = arith.addf %541, %542 : vector<2x96xf32>
    %544 = vector.extract_strided_slice %543 {offsets = [0, 0], sizes = [2, 32], strides = [1, 1]} : vector<2x96xf32> to vector<2x32xf32>
    %545 = arith.addf %537, %544 : vector<2x32xf32>
    %546 = arith.negf %545 : vector<2x32xf32>
    %547 = math.exp %546 : vector<2x32xf32>
    %cst_103 = arith.constant 1.000000e+00 : f32
    %548 = vector.broadcast %cst_103 : f32 to vector<2x32xf32>
    %549 = arith.addf %548, %547 : vector<2x32xf32>
    %550 = arith.divf %548, %549 : vector<2x32xf32>
    %551 = vector.extract_strided_slice %543 {offsets = [0, 32], sizes = [2, 32], strides = [1, 1]} : vector<2x96xf32> to vector<2x32xf32>
    %552 = arith.addf %538, %551 : vector<2x32xf32>
    %553 = arith.negf %552 : vector<2x32xf32>
    %554 = math.exp %553 : vector<2x32xf32>
    %cst_104 = arith.constant 1.000000e+00 : f32
    %555 = vector.broadcast %cst_104 : f32 to vector<2x32xf32>
    %556 = arith.addf %555, %554 : vector<2x32xf32>
    %557 = arith.divf %555, %556 : vector<2x32xf32>
    %558 = vector.extract_strided_slice %543 {offsets = [0, 64], sizes = [2, 32], strides = [1, 1]} : vector<2x96xf32> to vector<2x32xf32>
    %559 = arith.mulf %550, %558 : vector<2x32xf32>
    %560 = arith.addf %539, %559 : vector<2x32xf32>
    %561 = math.tanh %560 : vector<2x32xf32>
    %cst_105 = arith.constant 1.000000e+00 : f32
    %562 = vector.broadcast %cst_105 : f32 to vector<2x32xf32>
    %563 = arith.subf %562, %557 : vector<2x32xf32>
    %564 = arith.mulf %563, %561 : vector<2x32xf32>
    %565 = arith.mulf %557, %540 : vector<2x32xf32>
    %566 = arith.addf %564, %565 : vector<2x32xf32>
    %cst_106 = arith.constant dense<0.000000e+00> : vector<2x96xf32>
    %567 = tpu.matmul %566, %9, %cst_106 {dimension_numbers = #tpu.dot_dimension_numbers<[1], [0], [0], [1], [0, 0, 1, 1], [], []>} : vector<2x32xf32>, vector<32x96xf32>, vector<2x96xf32> -> vector<2x96xf32>
    %568 = vector.broadcast %11 : vector<1x96xf32> to vector<2x96xf32>
    %569 = arith.addf %567, %568 : vector<2x96xf32>
    %570 = vector.extract_strided_slice %569 {offsets = [0, 0], sizes = [2, 32], strides = [1, 1]} : vector<2x96xf32> to vector<2x32xf32>
    %571 = arith.addf %537, %570 : vector<2x32xf32>
    %572 = arith.negf %571 : vector<2x32xf32>
    %573 = math.exp %572 : vector<2x32xf32>
    %cst_107 = arith.constant 1.000000e+00 : f32
    %574 = vector.broadcast %cst_107 : f32 to vector<2x32xf32>
    %575 = arith.addf %574, %573 : vector<2x32xf32>
    %576 = arith.divf %574, %575 : vector<2x32xf32>
    %577 = vector.extract_strided_slice %569 {offsets = [0, 32], sizes = [2, 32], strides = [1, 1]} : vector<2x96xf32> to vector<2x32xf32>
    %578 = arith.addf %538, %577 : vector<2x32xf32>
    %579 = arith.negf %578 : vector<2x32xf32>
    %580 = math.exp %579 : vector<2x32xf32>
    %cst_108 = arith.constant 1.000000e+00 : f32
    %581 = vector.broadcast %cst_108 : f32 to vector<2x32xf32>
    %582 = arith.addf %581, %580 : vector<2x32xf32>
    %583 = arith.divf %581, %582 : vector<2x32xf32>
    %584 = vector.extract_strided_slice %569 {offsets = [0, 64], sizes = [2, 32], strides = [1, 1]} : vector<2x96xf32> to vector<2x32xf32>
    %585 = arith.mulf %576, %584 : vector<2x32xf32>
    %586 = arith.addf %539, %585 : vector<2x32xf32>
    %587 = math.tanh %586 : vector<2x32xf32>
    %cst_109 = arith.constant 1.000000e+00 : f32
    %588 = vector.broadcast %cst_109 : f32 to vector<2x32xf32>
    %589 = arith.subf %588, %583 : vector<2x32xf32>
    %590 = arith.mulf %589, %587 : vector<2x32xf32>
    %591 = arith.mulf %583, %566 : vector<2x32xf32>
    %592 = arith.addf %590, %591 : vector<2x32xf32>
    %cst_110 = arith.constant dense<0.000000e+00> : vector<2x96xf32>
    %593 = tpu.matmul %592, %9, %cst_110 {dimension_numbers = #tpu.dot_dimension_numbers<[1], [0], [0], [1], [0, 0, 1, 1], [], []>} : vector<2x32xf32>, vector<32x96xf32>, vector<2x96xf32> -> vector<2x96xf32>
    %594 = vector.broadcast %11 : vector<1x96xf32> to vector<2x96xf32>
    %595 = arith.addf %593, %594 : vector<2x96xf32>
    %596 = vector.extract_strided_slice %595 {offsets = [0, 0], sizes = [2, 32], strides = [1, 1]} : vector<2x96xf32> to vector<2x32xf32>
    %597 = arith.addf %537, %596 : vector<2x32xf32>
    %598 = arith.negf %597 : vector<2x32xf32>
    %599 = math.exp %598 : vector<2x32xf32>
    %cst_111 = arith.constant 1.000000e+00 : f32
    %600 = vector.broadcast %cst_111 : f32 to vector<2x32xf32>
    %601 = arith.addf %600, %599 : vector<2x32xf32>
    %602 = arith.divf %600, %601 : vector<2x32xf32>
    %603 = vector.extract_strided_slice %595 {offsets = [0, 32], sizes = [2, 32], strides = [1, 1]} : vector<2x96xf32> to vector<2x32xf32>
    %604 = arith.addf %538, %603 : vector<2x32xf32>
    %605 = arith.negf %604 : vector<2x32xf32>
    %606 = math.exp %605 : vector<2x32xf32>
    %cst_112 = arith.constant 1.000000e+00 : f32
    %607 = vector.broadcast %cst_112 : f32 to vector<2x32xf32>
    %608 = arith.addf %607, %606 : vector<2x32xf32>
    %609 = arith.divf %607, %608 : vector<2x32xf32>
    %610 = vector.extract_strided_slice %595 {offsets = [0, 64], sizes = [2, 32], strides = [1, 1]} : vector<2x96xf32> to vector<2x32xf32>
    %611 = arith.mulf %602, %610 : vector<2x32xf32>
    %612 = arith.addf %539, %611 : vector<2x32xf32>
    %613 = math.tanh %612 : vector<2x32xf32>
    %cst_113 = arith.constant 1.000000e+00 : f32
    %614 = vector.broadcast %cst_113 : f32 to vector<2x32xf32>
    %615 = arith.subf %614, %609 : vector<2x32xf32>
    %616 = arith.mulf %615, %613 : vector<2x32xf32>
    %617 = arith.mulf %609, %592 : vector<2x32xf32>
    %618 = arith.addf %616, %617 : vector<2x32xf32>
    %cst_114 = arith.constant dense<0.000000e+00> : vector<2x96xf32>
    %619 = tpu.matmul %618, %9, %cst_114 {dimension_numbers = #tpu.dot_dimension_numbers<[1], [0], [0], [1], [0, 0, 1, 1], [], []>} : vector<2x32xf32>, vector<32x96xf32>, vector<2x96xf32> -> vector<2x96xf32>
    %620 = vector.broadcast %11 : vector<1x96xf32> to vector<2x96xf32>
    %621 = arith.addf %619, %620 : vector<2x96xf32>
    %622 = vector.extract_strided_slice %621 {offsets = [0, 0], sizes = [2, 32], strides = [1, 1]} : vector<2x96xf32> to vector<2x32xf32>
    %623 = arith.addf %537, %622 : vector<2x32xf32>
    %624 = arith.negf %623 : vector<2x32xf32>
    %625 = math.exp %624 : vector<2x32xf32>
    %cst_115 = arith.constant 1.000000e+00 : f32
    %626 = vector.broadcast %cst_115 : f32 to vector<2x32xf32>
    %627 = arith.addf %626, %625 : vector<2x32xf32>
    %628 = arith.divf %626, %627 : vector<2x32xf32>
    %629 = vector.extract_strided_slice %621 {offsets = [0, 32], sizes = [2, 32], strides = [1, 1]} : vector<2x96xf32> to vector<2x32xf32>
    %630 = arith.addf %538, %629 : vector<2x32xf32>
    %631 = arith.negf %630 : vector<2x32xf32>
    %632 = math.exp %631 : vector<2x32xf32>
    %cst_116 = arith.constant 1.000000e+00 : f32
    %633 = vector.broadcast %cst_116 : f32 to vector<2x32xf32>
    %634 = arith.addf %633, %632 : vector<2x32xf32>
    %635 = arith.divf %633, %634 : vector<2x32xf32>
    %636 = vector.extract_strided_slice %621 {offsets = [0, 64], sizes = [2, 32], strides = [1, 1]} : vector<2x96xf32> to vector<2x32xf32>
    %637 = arith.mulf %628, %636 : vector<2x32xf32>
    %638 = arith.addf %539, %637 : vector<2x32xf32>
    %639 = math.tanh %638 : vector<2x32xf32>
    %cst_117 = arith.constant 1.000000e+00 : f32
    %640 = vector.broadcast %cst_117 : f32 to vector<2x32xf32>
    %641 = arith.subf %640, %635 : vector<2x32xf32>
    %642 = arith.mulf %641, %639 : vector<2x32xf32>
    %643 = arith.mulf %635, %618 : vector<2x32xf32>
    %644 = arith.addf %642, %643 : vector<2x32xf32>
    %645 = tpu.concatenate %566, %592, %618, %644 in 0 : vector<2x32xf32>, vector<2x32xf32>, vector<2x32xf32>, vector<2x32xf32> -> vector<8x32xf32>
    %cst_118 = arith.constant dense<0.000000e+00> : vector<8x10xf32>
    %646 = tpu.matmul %645, %12, %cst_118 {dimension_numbers = #tpu.dot_dimension_numbers<[1], [0], [0], [1], [0, 0, 1, 1], [], []>} : vector<8x32xf32>, vector<32x10xf32>, vector<8x10xf32> -> vector<8x10xf32>
    %647 = vector.broadcast %13 : vector<1x10xf32> to vector<8x10xf32>
    %648 = arith.addf %646, %647 : vector<8x10xf32>
    %649 = vector.extract_strided_slice %648 {offsets = [0, 0], sizes = [2, 10], strides = [1, 1]} : vector<8x10xf32> to vector<2x10xf32>
    %650 = vector.shape_cast %649 : vector<2x10xf32> to vector<2x1x10xf32>
    %c0_119 = arith.constant 0 : index
    %c0_120 = arith.constant 0 : index
    %c0_121 = arith.constant 0 : index
    %651 = vector.load %arg15[%c0_119, %c0_120, %c0_121] : memref<2x4x10xf32, #tpu.memory_space<vmem>>, vector<2x1x10xf32>
    tpu.vector_store %arg15[%c0_119, %c0_120, %c0_121], %650 {strides = array<i32>} : memref<2x4x10xf32, #tpu.memory_space<vmem>>, vector<2x1x10xf32>,
    %652 = vector.extract_strided_slice %648 {offsets = [2, 0], sizes = [2, 10], strides = [1, 1]} : vector<8x10xf32> to vector<2x10xf32>
    %653 = vector.shape_cast %652 : vector<2x10xf32> to vector<2x1x10xf32>
    %c0_122 = arith.constant 0 : index
    %c1 = arith.constant 1 : index
    %c0_123 = arith.constant 0 : index
    %654 = vector.load %arg15[%c0_122, %c1, %c0_123] : memref<2x4x10xf32, #tpu.memory_space<vmem>>, vector<2x1x10xf32>
    tpu.vector_store %arg15[%c0_122, %c1, %c0_123], %653 {strides = array<i32>} : memref<2x4x10xf32, #tpu.memory_space<vmem>>, vector<2x1x10xf32>,
    %655 = vector.extract_strided_slice %648 {offsets = [4, 0], sizes = [2, 10], strides = [1, 1]} : vector<8x10xf32> to vector<2x10xf32>
    %656 = vector.shape_cast %655 : vector<2x10xf32> to vector<2x1x10xf32>
    %c0_124 = arith.constant 0 : index
    %c2 = arith.constant 2 : index
    %c0_125 = arith.constant 0 : index
    %657 = vector.load %arg15[%c0_124, %c2, %c0_125] : memref<2x4x10xf32, #tpu.memory_space<vmem>>, vector<2x1x10xf32>
    tpu.vector_store %arg15[%c0_124, %c2, %c0_125], %656 {strides = array<i32>} : memref<2x4x10xf32, #tpu.memory_space<vmem>>, vector<2x1x10xf32>,
    %658 = vector.extract_strided_slice %648 {offsets = [6, 0], sizes = [2, 10], strides = [1, 1]} : vector<8x10xf32> to vector<2x10xf32>
    %659 = vector.shape_cast %658 : vector<2x10xf32> to vector<2x1x10xf32>
    %c0_126 = arith.constant 0 : index
    %c3 = arith.constant 3 : index
    %c0_127 = arith.constant 0 : index
    %660 = vector.load %arg15[%c0_126, %c3, %c0_127] : memref<2x4x10xf32, #tpu.memory_space<vmem>>, vector<2x1x10xf32>
    tpu.vector_store %arg15[%c0_126, %c3, %c0_127], %659 {strides = array<i32>} : memref<2x4x10xf32, #tpu.memory_space<vmem>>, vector<2x1x10xf32>,
    return
  }
}

</mosaic_0001>

<llo_original>
// kernel: subsampling_attention_forward.1
$region0: #{subsampling_attention_forward.1}
  #allocation0 [shape = 'u32[]', space=smem, size = 0x4, offset = 0x4, fixed_abs, tag = 'smem constant byte address 0x4 - core index']
  #allocation1 [shape = 'u32[72,128]{1,0:T(1,128)}', space=vmem, size = 0x9000, scoped, tag = 'internal scratch']
  %s0 = inlined_call_operand.vmem [shape: f32[32,8], index: 0, kind: input, shape index: {}]
  %s1 = inlined_call_operand.vmem [shape: f32[8,48], index: 1, kind: input, shape index: {}]
  %s2 = inlined_call_operand.vmem [shape: f32[16,48], index: 2, kind: input, shape index: {}]
  %s3 = inlined_call_operand.hbm [shape: f32[1,48], index: 3, kind: input, shape index: {}]
  %s4 = inlined_call_operand.hbm [shape: f32[1,48], index: 4, kind: input, shape index: {}]
  %s5 = inlined_call_operand.hbm [shape: f32[8,48], index: 5, kind: input, shape index: {}]
  %s6 = inlined_call_operand.hbm [shape: f32[16,48], index: 6, kind: input, shape index: {}]
  %s7 = inlined_call_operand.hbm [shape: f32[1,48], index: 7, kind: input, shape index: {}]
  %s8 = inlined_call_operand.hbm [shape: f32[1,48], index: 8, kind: input, shape index: {}]
  %s9 = inlined_call_operand.vmem [shape: f32[32,96], index: 9, kind: input, shape index: {}]
  %s10 = inlined_call_operand.vmem [shape: f32[32,96], index: 10, kind: input, shape index: {}]
  %s11 = inlined_call_operand.hbm [shape: f32[1,96], index: 11, kind: input, shape index: {}]
  %s12 = inlined_call_operand.hbm [shape: f32[1,96], index: 12, kind: input, shape index: {}]
  %s13 = inlined_call_operand.vmem [shape: f32[32,10], index: 13, kind: input, shape index: {}]
  %s14 = inlined_call_operand.hbm [shape: f32[1,10], index: 14, kind: input, shape index: {}]
  %s15 = inlined_call_operand.hbm [shape: f32[2,4,10], index: 15, kind: output, shape index: {}]
  %s16 = sld [smem:[#allocation0]]
  $region106: #{subsampling_attention_forward.1} parent=0
    _
  %s18 = ssub.s32 1, %s16
  %s19 = scalar_select 0, %s18, %s16
  $region1: #{subsampling_attention_forward.1} parent=0
    #allocation2 [shape = 'u8[512]{0}', space=vmem, size = 0x400, scoped, tag = 'input window, operand 3, single buffered']
    #allocation3 [shape = 's32[1]{0}', space=sflag, size = 0x4, scoped, tag = 'scoped memory for subsampling_attention_forward.1']
    #allocation4 [shape = 's32[1]{0}', space=sflag, size = 0x4, scoped, tag = 'scoped memory for subsampling_attention_forward.1']
    #allocation5 [shape = 'u8[512]{0}', space=vmem, size = 0x400, scoped, tag = 'input window, operand 4, single buffered']
    #allocation6 [shape = 's32[1]{0}', space=sflag, size = 0x4, scoped, tag = 'scoped memory for subsampling_attention_forward.1']
    #allocation7 [shape = 'u8[4096]{0}', space=vmem, size = 0x1000, scoped, tag = 'input window, operand 5, single buffered']
    #allocation8 [shape = 'u8[8192]{0}', space=vmem, size = 0x2000, scoped, tag = 'input window, operand 6, single buffered']
    #allocation9 [shape = 's32[1]{0}', space=sflag, size = 0x4, scoped, tag = 'scoped memory for subsampling_attention_forward.1']
    #allocation10 [shape = 'u8[512]{0}', space=vmem, size = 0x400, scoped, tag = 'input window, operand 7, single buffered']
    #allocation11 [shape = 'u8[512]{0}', space=vmem, size = 0x400, scoped, tag = 'input window, operand 8, single buffered']
    #allocation12 [shape = 's32[1]{0}', space=sflag, size = 0x4, scoped, tag = 'scoped memory for subsampling_attention_forward.1']
    #allocation13 [shape = 'u8[512]{0}', space=vmem, size = 0x400, scoped, tag = 'input window, operand 11, single buffered']
    #allocation14 [shape = 'u8[512]{0}', space=vmem, size = 0x400, scoped, tag = 'input window, operand 12, single buffered']
    #allocation15 [shape = 's32[1]{0}', space=sflag, size = 0x4, scoped, tag = 'scoped memory for subsampling_attention_forward.1']
    #allocation16 [shape = 'u8[512]{0}', space=vmem, size = 0x400, scoped, tag = 'input window, operand 14, single buffered']
    #allocation17 [shape = 'u8[4096]{0}', space=vmem, size = 0x1000, scoped, tag = 'output window, operand 0, single buffered']
    %20 = vsyncpa [#allocation3], 0
    %21 = vsyncpa [#allocation6], 0
    %22 = vsyncpa [#allocation9], 0
    %23 = vsyncpa [#allocation12], 0
    %24 = vsyncpa [#allocation15], 0
    %25 = vsyncpa [#allocation4], 0
    // Predicated region
    $region2: #{subsampling_attention_forward.1} parent=1 // pred_check
      _
    $region3: #{subsampling_attention_forward.1} parent=1 // pred_check_branch
      %27 = sbr.rel (0) target = $region5
    $region4: #{subsampling_attention_forward.1} parent=1 // pred_region
      _
    $region5: #{subsampling_attention_forward.1} parent=1 // pred_fallthru
      _
    // Predicated region
    $region6: #{subsampling_attention_forward.1} parent=1 // pred_check
      _
    $region7: #{subsampling_attention_forward.1} parent=1 // pred_check_branch
      %29 = sbr.rel (0) target = $region9
    $region8: #{subsampling_attention_forward.1} parent=1 // pred_region
      _
    $region9: #{subsampling_attention_forward.1} parent=1 // pred_fallthru
      _
    // Predicated region
    $region10: #{subsampling_attention_forward.1} parent=1 // pred_check
      _
    $region11: #{subsampling_attention_forward.1} parent=1 // pred_check_branch
      %31 = sbr.rel (0) target = $region13
    $region12: #{subsampling_attention_forward.1} parent=1 // pred_region
      _
    $region13: #{subsampling_attention_forward.1} parent=1 // pred_fallthru
      _
    // Predicated region
    $region14: #{subsampling_attention_forward.1} parent=1 // pred_check
      _
    $region15: #{subsampling_attention_forward.1} parent=1 // pred_check_branch
      %33 = sbr.rel (0) target = $region17
    $region16: #{subsampling_attention_forward.1} parent=1 // pred_region
      %35 = vsyncadd [#allocation3], 0
      %s37 = sshll.u32 %s3, 4
      %s38 = int_to_ptr.hbm [resolvable:$true] %s37
      %s39 = sshll.u32 [#allocation2], 4
      %s40 = int_to_ptr.vmem [resolvable:$true] %s39
      %42 = dma.hbm_to_vmem [thread:$0]  %s38, 16, %s40, [#allocation3]
    $region17: #{subsampling_attention_forward.1} parent=1 // pred_fallthru
      _
    // Predicated region
    $region18: #{subsampling_attention_forward.1} parent=1 // pred_check
      _
    $region19: #{subsampling_attention_forward.1} parent=1 // pred_check_branch
      %44 = sbr.rel (0) target = $region21
    $region20: #{subsampling_attention_forward.1} parent=1 // pred_region
      %46 = vsyncadd [#allocation6], 0
      %s48 = sshll.u32 %s4, 4
      %s49 = int_to_ptr.hbm [resolvable:$true] %s48
      %s50 = sshll.u32 [#allocation5], 4
      %s51 = int_to_ptr.vmem [resolvable:$true] %s50
      %53 = dma.hbm_to_vmem [thread:$0]  %s49, 16, %s51, [#allocation6]
    $region21: #{subsampling_attention_forward.1} parent=1 // pred_fallthru
      _
    // Predicated region
    $region22: #{subsampling_attention_forward.1} parent=1 // pred_check
      _
    $region23: #{subsampling_attention_forward.1} parent=1 // pred_check_branch
      %55 = sbr.rel (0) target = $region25
    $region24: #{subsampling_attention_forward.1} parent=1 // pred_region
      %57 = vsyncadd [#allocation6], 0
      %s59 = sshll.u32 %s5, 4
      %s60 = int_to_ptr.hbm [resolvable:$true] %s59
      %s61 = sshll.u32 [#allocation7], 4
      %s62 = int_to_ptr.vmem [resolvable:$true] %s61
      %64 = dma.hbm_to_vmem [thread:$0]  %s60, 128, %s62, [#allocation6]
    $region25: #{subsampling_attention_forward.1} parent=1 // pred_fallthru
      _
    // Predicated region
    $region26: #{subsampling_attention_forward.1} parent=1 // pred_check
      _
    $region27: #{subsampling_attention_forward.1} parent=1 // pred_check_branch
      %66 = sbr.rel (0) target = $region29
    $region28: #{subsampling_attention_forward.1} parent=1 // pred_region
      %68 = vsyncadd [#allocation9], 0
      %s69 = sshll.u32 %s6, 4
      %s70 = int_to_ptr.hbm [resolvable:$true] %s69
      %s71 = sshll.u32 [#allocation8], 4
      %s72 = int_to_ptr.vmem [resolvable:$true] %s71
      %77 = dma.hbm_to_vmem [thread:$0]  %s70, 256, %s72, [#allocation9], 128, 128, 8
    $region29: #{subsampling_attention_forward.1} parent=1 // pred_fallthru
      _
    // Predicated region
    $region30: #{subsampling_attention_forward.1} parent=1 // pred_check
      _
    $region31: #{subsampling_attention_forward.1} parent=1 // pred_check_branch
      %79 = sbr.rel (0) target = $region33
    $region32: #{subsampling_attention_forward.1} parent=1 // pred_region
      %81 = vsyncadd [#allocation9], 0
      %s83 = sshll.u32 %s7, 4
      %s84 = int_to_ptr.hbm [resolvable:$true] %s83
      %s85 = sshll.u32 [#allocation10], 4
      %s86 = int_to_ptr.vmem [resolvable:$true] %s85
      %88 = dma.hbm_to_vmem [thread:$0]  %s84, 16, %s86, [#allocation9]
    $region33: #{subsampling_attention_forward.1} parent=1 // pred_fallthru
      _
    // Predicated region
    $region34: #{subsampling_attention_forward.1} parent=1 // pred_check
      _
    $region35: #{subsampling_attention_forward.1} parent=1 // pred_check_branch
      %90 = sbr.rel (0) target = $region37
    $region36: #{subsampling_attention_forward.1} parent=1 // pred_region
      %92 = vsyncadd [#allocation12], 0
      %s94 = sshll.u32 %s8, 4
      %s95 = int_to_ptr.hbm [resolvable:$true] %s94
      %s96 = sshll.u32 [#allocation11], 4
      %s97 = int_to_ptr.vmem [resolvable:$true] %s96
      %99 = dma.hbm_to_vmem [thread:$0]  %s95, 16, %s97, [#allocation12]
    $region37: #{subsampling_attention_forward.1} parent=1 // pred_fallthru
      _
    // Predicated region
    $region38: #{subsampling_attention_forward.1} parent=1 // pred_check
      _
    $region39: #{subsampling_attention_forward.1} parent=1 // pred_check_branch
      %101 = sbr.rel (0) target = $region41
    $region40: #{subsampling_attention_forward.1} parent=1 // pred_region
      _
    $region41: #{subsampling_attention_forward.1} parent=1 // pred_fallthru
      _
    // Predicated region
    $region42: #{subsampling_attention_forward.1} parent=1 // pred_check
      _
    $region43: #{subsampling_attention_forward.1} parent=1 // pred_check_branch
      %103 = sbr.rel (0) target = $region45
    $region44: #{subsampling_attention_forward.1} parent=1 // pred_region
      _
    $region45: #{subsampling_attention_forward.1} parent=1 // pred_fallthru
      _
    // Predicated region
    $region46: #{subsampling_attention_forward.1} parent=1 // pred_check
      _
    $region47: #{subsampling_attention_forward.1} parent=1 // pred_check_branch
      %105 = sbr.rel (0) target = $region49
    $region48: #{subsampling_attention_forward.1} parent=1 // pred_region
      %107 = vsyncadd [#allocation12], 0
      %s109 = sshll.u32 %s11, 4
      %s110 = int_to_ptr.hbm [resolvable:$true] %s109
      %s111 = sshll.u32 [#allocation13], 4
      %s112 = int_to_ptr.vmem [resolvable:$true] %s111
      %114 = dma.hbm_to_vmem [thread:$0]  %s110, 16, %s112, [#allocation12]
    $region49: #{subsampling_attention_forward.1} parent=1 // pred_fallthru
      _
    // Predicated region
    $region50: #{subsampling_attention_forward.1} parent=1 // pred_check
      _
    $region51: #{subsampling_attention_forward.1} parent=1 // pred_check_branch
      %116 = sbr.rel (0) target = $region53
    $region52: #{subsampling_attention_forward.1} parent=1 // pred_region
      %118 = vsyncadd [#allocation15], 0
      %s120 = sshll.u32 %s12, 4
      %s121 = int_to_ptr.hbm [resolvable:$true] %s120
      %s122 = sshll.u32 [#allocation14], 4
      %s123 = int_to_ptr.vmem [resolvable:$true] %s122
      %125 = dma.hbm_to_vmem [thread:$0]  %s121, 16, %s123, [#allocation15]
    $region53: #{subsampling_attention_forward.1} parent=1 // pred_fallthru
      _
    // Predicated region
    $region54: #{subsampling_attention_forward.1} parent=1 // pred_check
      _
    $region55: #{subsampling_attention_forward.1} parent=1 // pred_check_branch
      %127 = sbr.rel (0) target = $region57
    $region56: #{subsampling_attention_forward.1} parent=1 // pred_region
      _
    $region57: #{subsampling_attention_forward.1} parent=1 // pred_fallthru
      _
    // Predicated region
    $region58: #{subsampling_attention_forward.1} parent=1 // pred_check
      _
    $region59: #{subsampling_attention_forward.1} parent=1 // pred_check_branch
      %129 = sbr.rel (0) target = $region61
    $region60: #{subsampling_attention_forward.1} parent=1 // pred_region
      %131 = vsyncadd [#allocation15], 0
      %s133 = sshll.u32 %s14, 4
      %s134 = int_to_ptr.hbm [resolvable:$true] %s133
      %s135 = sshll.u32 [#allocation16], 4
      %s136 = int_to_ptr.vmem [resolvable:$true] %s135
      %138 = dma.hbm_to_vmem [thread:$0]  %s134, 16, %s136, [#allocation15]
    $region61: #{subsampling_attention_forward.1} parent=1 // pred_fallthru
      _
    // Predicated region
    $region62: #{subsampling_attention_forward.1} parent=1 // pred_check
      _
    $region63: #{subsampling_attention_forward.1} parent=1 // pred_check_branch
      %140 = sbr.rel (0) target = $region65
    $region64: #{subsampling_attention_forward.1} parent=1 // pred_region
      %142 = dma.done [#allocation3], 16
    $region65: #{subsampling_attention_forward.1} parent=1 // pred_fallthru
      _
    // Predicated region
    $region66: #{subsampling_attention_forward.1} parent=1 // pred_check
      _
    $region67: #{subsampling_attention_forward.1} parent=1 // pred_check_branch
      %144 = sbr.rel (0) target = $region69
    $region68: #{subsampling_attention_forward.1} parent=1 // pred_region
      %146 = dma.done [#allocation6], 16
    $region69: #{subsampling_attention_forward.1} parent=1 // pred_fallthru
      _
    // Predicated region
    $region70: #{subsampling_attention_forward.1} parent=1 // pred_check
      _
    $region71: #{subsampling_attention_forward.1} parent=1 // pred_check_branch
      %148 = sbr.rel (0) target = $region73
    $region72: #{subsampling_attention_forward.1} parent=1 // pred_region
      %150 = dma.done [#allocation6], 128
    $region73: #{subsampling_attention_forward.1} parent=1 // pred_fallthru
      _
    // Predicated region
    $region74: #{subsampling_attention_forward.1} parent=1 // pred_check
      _
    $region75: #{subsampling_attention_forward.1} parent=1 // pred_check_branch
      %152 = sbr.rel (0) target = $region77
    $region76: #{subsampling_attention_forward.1} parent=1 // pred_region
      %154 = dma.done [#allocation9], 256
    $region77: #{subsampling_attention_forward.1} parent=1 // pred_fallthru
      _
    // Predicated region
    $region78: #{subsampling_attention_forward.1} parent=1 // pred_check
      _
    $region79: #{subsampling_attention_forward.1} parent=1 // pred_check_branch
      %156 = sbr.rel (0) target = $region81
    $region80: #{subsampling_attention_forward.1} parent=1 // pred_region
      %158 = dma.done [#allocation9], 16
    $region81: #{subsampling_attention_forward.1} parent=1 // pred_fallthru
      _
    // Predicated region
    $region82: #{subsampling_attention_forward.1} parent=1 // pred_check
      _
    $region83: #{subsampling_attention_forward.1} parent=1 // pred_check_branch
      %160 = sbr.rel (0) target = $region85
    $region84: #{subsampling_attention_forward.1} parent=1 // pred_region
      %162 = dma.done [#allocation12], 16
    $region85: #{subsampling_attention_forward.1} parent=1 // pred_fallthru
      _
    // Predicated region
    $region86: #{subsampling_attention_forward.1} parent=1 // pred_check
      _
    $region87: #{subsampling_attention_forward.1} parent=1 // pred_check_branch
      %164 = sbr.rel (0) target = $region89
    $region88: #{subsampling_attention_forward.1} parent=1 // pred_region
      %166 = dma.done [#allocation12], 16
    $region89: #{subsampling_attention_forward.1} parent=1 // pred_fallthru
      _
    // Predicated region
    $region90: #{subsampling_attention_forward.1} parent=1 // pred_check
      _
    $region91: #{subsampling_attention_forward.1} parent=1 // pred_check_branch
      %168 = sbr.rel (0) target = $region93
    $region92: #{subsampling_attention_forward.1} parent=1 // pred_region
      %170 = dma.done [#allocation15], 16
    $region93: #{subsampling_attention_forward.1} parent=1 // pred_fallthru
      _
    // Predicated region
    $region94: #{subsampling_attention_forward.1} parent=1 // pred_check
      _
    $region95: #{subsampling_attention_forward.1} parent=1 // pred_check_branch
      %172 = sbr.rel (0) target = $region97
    $region96: #{subsampling_attention_forward.1} parent=1 // pred_region
      %174 = dma.done [#allocation15], 16
    $region97: #{subsampling_attention_forward.1} parent=1 // pred_fallthru
      _
    %v175 = vld [vmem:[%s1] sm:$0xff]
    %v176 = vld [vmem:[%s2] sm:$0xff]
    %v177 = vld [vmem:[%s2 + $0x8] sm:$0xff]
    %v178 = vld [vmem:[#allocation2] sm:$0x1]
    %v179 = vld [vmem:[#allocation5] sm:$0x1]
    %v180 = vld [vmem:[#allocation7] sm:$0xff]
    %v181 = vld [vmem:[#allocation8] sm:$0xff]
    %v182 = vld [vmem:[#allocation8 + $0x8] sm:$0xff]
    %v183 = vld [vmem:[#allocation10] sm:$0x1]
    %v184 = vld [vmem:[#allocation11] sm:$0x1]
    %v185 = vld [vmem:[%s9] sm:$0xff]
    %v186 = vld [vmem:[%s9 + $0x8] sm:$0xff]
    %v187 = vld [vmem:[%s9 + $0x10] sm:$0xff]
    %v188 = vld [vmem:[%s9 + $0x18] sm:$0xff]
    %v189 = vld [vmem:[%s10] sm:$0xff]
    %v190 = vld [vmem:[%s10 + $0x8] sm:$0xff]
    %v191 = vld [vmem:[%s10 + $0x10] sm:$0xff]
    %v192 = vld [vmem:[%s10 + $0x18] sm:$0xff]
    %v193 = vld [vmem:[#allocation13] sm:$0x1]
    %v194 = vld [vmem:[#allocation14] sm:$0x1]
    %v195 = vld [vmem:[%s13] sm:$0xff]
    %v196 = vld [vmem:[%s13 + $0x8] sm:$0xff]
    %v197 = vld [vmem:[%s13 + $0x10] sm:$0xff]
    %v198 = vld [vmem:[%s13 + $0x18] sm:$0xff]
    %v199 = vld [vmem:[#allocation16] sm:$0x1]
    %v200 = vld [vmem:[%s0] sm:$0xff]
    %v201 = vld [vmem:[%s0 + $0x8] sm:$0xff]
    %v202 = vld [vmem:[%s0 + $0x10] sm:$0xff]
    %v203 = vld [vmem:[%s0 + $0x18] sm:$0xff]
    %v205 = vperm.slane %v178, 0
    %vm207 = vcmask 64512
    %v209 = vsel %vm207, %v200, 0
    %v212 = vsel %vm207, %v201, 0
    %v215 = vsel %vm207, %v202, 0
    %v218 = vsel %vm207, %v203, 0
    %220 = vmatpush.msra.mxu0 0.0
    %221 = vmatpush.msra.mxu0 0.0
    %222 = vmatpush.msra.mxu0 0.0
    %223 = vmatpush.msra.mxu0 0.0
    %224 = vmatpush.msra.mxu0 0.0
    %225 = vmatpush.msra.mxu0 0.0
    %226 = vmatpush.msra.mxu0 0.0
    %227 = vmatpush.msra.mxu0 0.0
    %228 = vmatpush.msra.mxu0 0.0
    %229 = vmatpush.msra.mxu0 0.0
    %230 = vmatpush.msra.mxu0 0.0
    %231 = vmatpush.msra.mxu0 0.0
    %232 = vmatpush.msra.mxu0 0.0
    %233 = vmatpush.msra.mxu0 0.0
    %234 = vmatpush.msra.mxu0 0.0
    %235 = vmatpush.msra.mxu0 %v175
    %236 = vmatmul.f32.gmra.mxu0 %v209
    %v237 = vpop.f32.mrf.mxu0
    %v238 = vadd.f32 %v205, %v237
    %239 = vmatmul.f32.gmra.mxu0 %v212
    %v240 = vpop.f32.mrf.mxu0
    %v241 = vadd.f32 %v205, %v240
    %242 = vmatmul.f32.gmra.mxu0 %v215
    %v243 = vpop.f32.mrf.mxu0
    %v244 = vadd.f32 %v205, %v243
    %245 = vmatmul.f32.gmra.mxu0 %v218
    %v246 = vpop.f32.mrf.mxu0
    %v247 = vadd.f32 %v205, %v246
    %248 = vdwg.mxu0
    %v250 = vperm.slane %v183, 0
    %252 = vmatpush.msra.mxu0 0.0
    %253 = vmatpush.msra.mxu0 0.0
    %254 = vmatpush.msra.mxu0 0.0
    %255 = vmatpush.msra.mxu0 0.0
    %256 = vmatpush.msra.mxu0 0.0
    %257 = vmatpush.msra.mxu0 0.0
    %258 = vmatpush.msra.mxu0 0.0
    %259 = vmatpush.msra.mxu0 0.0
    %260 = vmatpush.msra.mxu0 0.0
    %261 = vmatpush.msra.mxu0 0.0
    %262 = vmatpush.msra.mxu0 0.0
    %263 = vmatpush.msra.mxu0 0.0
    %264 = vmatpush.msra.mxu0 0.0
    %265 = vmatpush.msra.mxu0 0.0
    %266 = vmatpush.msra.mxu0 0.0
    %267 = vmatpush.msra.mxu0 %v180
    %268 = vmatmul.f32.gmra.mxu0 %v209
    %v269 = vpop.f32.mrf.mxu0
    %270 = vmatmul.f32.gmra.mxu0 %v212
    %v271 = vpop.f32.mrf.mxu0
    %272 = vmatmul.f32.gmra.mxu0 %v215
    %v273 = vpop.f32.mrf.mxu0
    %274 = vmatmul.f32.gmra.mxu0 %v218
    %v275 = vpop.f32.mrf.mxu0
    %v276 = vadd.f32 %v250, %v275
    %277 = vdwg.mxu0
    %v279 = vperm.slane %v179, 0
    %vm281 = vcmask 130048
    %v283 = vsel %vm281, 0.0, 0
    %285 = vmatpush.msra.mxu0 0.0
    %286 = vmatpush.msra.mxu0 0.0
    %287 = vmatpush.msra.mxu0 0.0
    %288 = vmatpush.msra.mxu0 0.0
    %289 = vmatpush.msra.mxu0 0.0
    %290 = vmatpush.msra.mxu0 0.0
    %291 = vmatpush.msra.mxu0 0.0
    %292 = vmatpush.msra.mxu0 0.0
    %293 = vmatpush.msra.mxu0 0.0
    %294 = vmatpush.msra.mxu0 0.0
    %295 = vmatpush.msra.mxu0 0.0
    %296 = vmatpush.msra.mxu0 0.0
    %297 = vmatpush.msra.mxu0 0.0
    %298 = vmatpush.msra.mxu0 0.0
    %299 = vmatpush.msra.mxu0 %v177
    %300 = vmatpush.msra.mxu0 %v176
    %301 = vmatmul.f32.gmra.mxu0 %v283
    %v302 = vpop.f32.mrf.mxu0
    %v303 = vadd.f32 %v279, %v302
    %304 = vdwg.mxu0
    %v305 = vadd.f32 %v238, %v303
    %v306 = vxor.u32 %v305, 2147483648
    %v307 = vmul.f32 %v306, 1.442695
    %v308 = vpow.pop %v307
    %v309 = vadd.f32 %v308, 1.0
    %v310 = vrcp.pop %v309
    %v311 = vmul.f32 %v309, %v310
    %v312 = vsub.f32 1.0, %v311
    %v313 = vmul.f32 %v310, %v312
    %v314 = vadd.f32 %v310, %v313
    %vm315 = vweird.f32 %v309
    %vm316 = vweird.f32 %v310
    %vm317 = vmor %vm315, %vm316
    %v318 = vsel %vm317, %v310, %v314
    %v319 = vand.u32 2147483647, %v309
    %vm320 = vcmp.eq.f32.partialorder %v319, 8.507059e+37
    %v321 = vand.u32 %v309, 2147483648
    %v322 = vor.u32 1.1754944e-38, %v321
    %v323 = vsel %vm320, %v322, %v318
    %v324 = vmul.f32 1.0, %v323
    %326 = vrot.lane.b32.xlu0 %v303, 96
    %v327 = vpop.permute.xlu0 %326
    %v329 = vmul.f32 %v324, %v327
    %331 = vrot.lane.b32.xlu0 %v329, 32
    %v332 = vpop.permute.xlu0 %331
    %v334 = vadd.f32 %v238, %v332
    %v335 = vtanh.pop %v334
    %v336 = vsub.f32 1.0, %v324
    %338 = vrot.lane.b32.xlu0 %v335, 112
    %v339 = vpop.permute.xlu0 %338
    %v341 = vmul.f32 %v336, %v339
    %v342 = vmul.f32 %v324, 0.0
    %v343 = vadd.f32 %v341, %v342
    %345 = vrot.lane.b32.xlu0 %v343, 112
    %v346 = vpop.permute.xlu0 %345
    %v347 = vsel %vm281, %v346, 0
    %349 = vmatpush.msra.mxu0 0.0
    %350 = vmatpush.msra.mxu0 0.0
    %351 = vmatpush.msra.mxu0 0.0
    %352 = vmatpush.msra.mxu0 0.0
    %353 = vmatpush.msra.mxu0 0.0
    %354 = vmatpush.msra.mxu0 0.0
    %355 = vmatpush.msra.mxu0 0.0
    %356 = vmatpush.msra.mxu0 0.0
    %357 = vmatpush.msra.mxu0 0.0
    %358 = vmatpush.msra.mxu0 0.0
    %359 = vmatpush.msra.mxu0 0.0
    %360 = vmatpush.msra.mxu0 0.0
    %361 = vmatpush.msra.mxu0 0.0
    %362 = vmatpush.msra.mxu0 0.0
    %363 = vmatpush.msra.mxu0 %v177
    %364 = vmatpush.msra.mxu0 %v176
    %365 = vmatmul.f32.gmra.mxu0 %v347
    %v366 = vpop.f32.mrf.mxu0
    %v367 = vadd.f32 %v279, %v366
    %368 = vdwg.mxu0
    %v370 = vrot.slane %v367, 6
    %v372 = vadd.f32 %v238, %v370
    %v373 = vxor.u32 %v372, 2147483648
    %v374 = vmul.f32 %v373, 1.442695
    %v375 = vpow.pop %v374
    %v376 = vadd.f32 %v375, 1.0
    %v377 = vrcp.pop %v376
    %v378 = vmul.f32 %v376, %v377
    %v379 = vsub.f32 1.0, %v378
    %v380 = vmul.f32 %v377, %v379
    %v381 = vadd.f32 %v377, %v380
    %vm382 = vweird.f32 %v376
    %vm383 = vweird.f32 %v377
    %vm384 = vmor %vm382, %vm383
    %v385 = vsel %vm384, %v377, %v381
    %v386 = vand.u32 2147483647, %v376
    %vm387 = vcmp.eq.f32.partialorder %v386, 8.507059e+37
    %v388 = vand.u32 %v376, 2147483648
    %v389 = vor.u32 1.1754944e-38, %v388
    %v390 = vsel %vm387, %v389, %v385
    %v391 = vmul.f32 1.0, %v390
    %392 = vrot.lane.b32.xlu0 %v370, 96
    %v393 = vpop.permute.xlu0 %392
    %v395 = vmul.f32 %v391, %v393
    %397 = vrot.lane.b32.xlu0 %v395, 32
    %v398 = vpop.permute.xlu0 %397
    %v400 = vadd.f32 %v238, %v398
    %v401 = vtanh.pop %v400
    %v402 = vsub.f32 1.0, %v391
    %404 = vrot.lane.b32.xlu0 %v401, 112
    %v405 = vpop.permute.xlu0 %404
    %v407 = vmul.f32 %v402, %v405
    %v408 = vrot.slane %v343, 6
    %v410 = vmul.f32 %v391, %v408
    %v411 = vadd.f32 %v407, %v410
    %v413 = vrot.slane %v411, 2
    %414 = vrot.lane.b32.xlu0 %v413, 112
    %v415 = vpop.permute.xlu0 %414
    %v416 = vsel %vm281, %v415, 0
    %418 = vmatpush.msra.mxu0 0.0
    %419 = vmatpush.msra.mxu0 0.0
    %420 = vmatpush.msra.mxu0 0.0
    %421 = vmatpush.msra.mxu0 0.0
    %422 = vmatpush.msra.mxu0 0.0
    %423 = vmatpush.msra.mxu0 0.0
    %424 = vmatpush.msra.mxu0 0.0
    %425 = vmatpush.msra.mxu0 0.0
    %426 = vmatpush.msra.mxu0 0.0
    %427 = vmatpush.msra.mxu0 0.0
    %428 = vmatpush.msra.mxu0 0.0
    %429 = vmatpush.msra.mxu0 0.0
    %430 = vmatpush.msra.mxu0 0.0
    %431 = vmatpush.msra.mxu0 0.0
    %432 = vmatpush.msra.mxu0 %v177
    %433 = vmatpush.msra.mxu0 %v176
    %434 = vmatmul.f32.gmra.mxu0 %v416
    %v435 = vpop.f32.mrf.mxu0
    %v436 = vadd.f32 %v279, %v435
    %437 = vdwg.mxu0
    %v439 = vrot.slane %v436, 4
    %v441 = vadd.f32 %v238, %v439
    %v442 = vxor.u32 %v441, 2147483648
    %v443 = vmul.f32 %v442, 1.442695
    %v444 = vpow.pop %v443
    %v445 = vadd.f32 %v444, 1.0
    %v446 = vrcp.pop %v445
    %v447 = vmul.f32 %v445, %v446
    %v448 = vsub.f32 1.0, %v447
    %v449 = vmul.f32 %v446, %v448
    %v450 = vadd.f32 %v446, %v449
    %vm451 = vweird.f32 %v445
    %vm452 = vweird.f32 %v446
    %vm453 = vmor %vm451, %vm452
    %v454 = vsel %vm453, %v446, %v450
    %v455 = vand.u32 2147483647, %v445
    %vm456 = vcmp.eq.f32.partialorder %v455, 8.507059e+37
    %v457 = vand.u32 %v445, 2147483648
    %v458 = vor.u32 1.1754944e-38, %v457
    %v459 = vsel %vm456, %v458, %v454
    %v460 = vmul.f32 1.0, %v459
    %461 = vrot.lane.b32.xlu0 %v439, 96
    %v462 = vpop.permute.xlu0 %461
    %v464 = vmul.f32 %v460, %v462
    %466 = vrot.lane.b32.xlu0 %v464, 32
    %v467 = vpop.permute.xlu0 %466
    %v469 = vadd.f32 %v238, %v467
    %v470 = vtanh.pop %v469
    %v471 = vsub.f32 1.0, %v460
    %473 = vrot.lane.b32.xlu0 %v470, 112
    %v474 = vpop.permute.xlu0 %473
    %v476 = vmul.f32 %v471, %v474
    %v477 = vrot.slane %v411, 6
    %v479 = vmul.f32 %v460, %v477
    %v480 = vadd.f32 %v476, %v479
    %v482 = vrot.slane %v480, 4
    %483 = vrot.lane.b32.xlu0 %v482, 112
    %v484 = vpop.permute.xlu0 %483
    %v485 = vsel %vm281, %v484, 0
    %487 = vmatpush.msra.mxu0 0.0
    %488 = vmatpush.msra.mxu0 0.0
    %489 = vmatpush.msra.mxu0 0.0
    %490 = vmatpush.msra.mxu0 0.0
    %491 = vmatpush.msra.mxu0 0.0
    %492 = vmatpush.msra.mxu0 0.0
    %493 = vmatpush.msra.mxu0 0.0
    %494 = vmatpush.msra.mxu0 0.0
    %495 = vmatpush.msra.mxu0 0.0
    %496 = vmatpush.msra.mxu0 0.0
    %497 = vmatpush.msra.mxu0 0.0
    %498 = vmatpush.msra.mxu0 0.0
    %499 = vmatpush.msra.mxu0 0.0
    %500 = vmatpush.msra.mxu0 0.0
    %501 = vmatpush.msra.mxu0 %v177
    %502 = vmatpush.msra.mxu0 %v176
    %503 = vmatmul.f32.gmra.mxu0 %v485
    %v504 = vpop.f32.mrf.mxu0
    %v505 = vadd.f32 %v279, %v504
    %506 = vdwg.mxu0
    %v508 = vrot.slane %v505, 2
    %v510 = vadd.f32 %v238, %v508
    %v511 = vxor.u32 %v510, 2147483648
    %v512 = vmul.f32 %v511, 1.442695
    %v513 = vpow.pop %v512
    %v514 = vadd.f32 %v513, 1.0
    %v515 = vrcp.pop %v514
    %v516 = vmul.f32 %v514, %v515
    %v517 = vsub.f32 1.0, %v516
    %v518 = vmul.f32 %v515, %v517
    %v519 = vadd.f32 %v515, %v518
    %vm520 = vweird.f32 %v514
    %vm521 = vweird.f32 %v515
    %vm522 = vmor %vm520, %vm521
    %v523 = vsel %vm522, %v515, %v519
    %v524 = vand.u32 2147483647, %v514
    %vm525 = vcmp.eq.f32.partialorder %v524, 8.507059e+37
    %v526 = vand.u32 %v514, 2147483648
    %v527 = vor.u32 1.1754944e-38, %v526
    %v528 = vsel %vm525, %v527, %v523
    %v529 = vmul.f32 1.0, %v528
    %530 = vrot.lane.b32.xlu0 %v508, 96
    %v531 = vpop.permute.xlu0 %530
    %v533 = vmul.f32 %v529, %v531
    %535 = vrot.lane.b32.xlu0 %v533, 32
    %v536 = vpop.permute.xlu0 %535
    %v538 = vadd.f32 %v238, %v536
    %v539 = vtanh.pop %v538
    %v540 = vsub.f32 1.0, %v529
    %542 = vrot.lane.b32.xlu0 %v539, 112
    %v543 = vpop.permute.xlu0 %542
    %v545 = vmul.f32 %v540, %v543
    %v546 = vrot.slane %v480, 6
    %v548 = vmul.f32 %v529, %v546
    %v549 = vadd.f32 %v545, %v548
    %v551 = vrot.slane %v549, 6
    %552 = vrot.lane.b32.xlu0 %v551, 112
    %v553 = vpop.permute.xlu0 %552
    %v554 = vsel %vm281, %v553, 0
    %556 = vmatpush.msra.mxu0 0.0
    %557 = vmatpush.msra.mxu0 0.0
    %558 = vmatpush.msra.mxu0 0.0
    %559 = vmatpush.msra.mxu0 0.0
    %560 = vmatpush.msra.mxu0 0.0
    %561 = vmatpush.msra.mxu0 0.0
    %562 = vmatpush.msra.mxu0 0.0
    %563 = vmatpush.msra.mxu0 0.0
    %564 = vmatpush.msra.mxu0 0.0
    %565 = vmatpush.msra.mxu0 0.0
    %566 = vmatpush.msra.mxu0 0.0
    %567 = vmatpush.msra.mxu0 0.0
    %568 = vmatpush.msra.mxu0 0.0
    %569 = vmatpush.msra.mxu0 0.0
    %570 = vmatpush.msra.mxu0 %v177
    %571 = vmatpush.msra.mxu0 %v176
    %572 = vmatmul.f32.gmra.mxu0 %v554
    %v573 = vpop.f32.mrf.mxu0
    %v574 = vadd.f32 %v279, %v573
    %575 = vdwg.mxu0
    %v576 = vadd.f32 %v241, %v574
    %v577 = vxor.u32 %v576, 2147483648
    %v578 = vmul.f32 %v577, 1.442695
    %v579 = vpow.pop %v578
    %v580 = vadd.f32 %v579, 1.0
    %v581 = vrcp.pop %v580
    %v582 = vmul.f32 %v580, %v581
    %v583 = vsub.f32 1.0, %v582
    %v584 = vmul.f32 %v581, %v583
    %v585 = vadd.f32 %v581, %v584
    %vm586 = vweird.f32 %v580
    %vm587 = vweird.f32 %v581
    %vm588 = vmor %vm586, %vm587
    %v589 = vsel %vm588, %v581, %v585
    %v590 = vand.u32 2147483647, %v580
    %vm591 = vcmp.eq.f32.partialorder %v590, 8.507059e+37
    %v592 = vand.u32 %v580, 2147483648
    %v593 = vor.u32 1.1754944e-38, %v592
    %v594 = vsel %vm591, %v593, %v589
    %v595 = vmul.f32 1.0, %v594
    %597 = vrot.lane.b32.xlu0 %v574, 96
    %v598 = vpop.permute.xlu0 %597
    %v600 = vmul.f32 %v595, %v598
    %602 = vrot.lane.b32.xlu0 %v600, 32
    %v603 = vpop.permute.xlu0 %602
    %v605 = vadd.f32 %v241, %v603
    %v606 = vtanh.pop %v605
    %v607 = vsub.f32 1.0, %v595
    %609 = vrot.lane.b32.xlu0 %v606, 112
    %v610 = vpop.permute.xlu0 %609
    %v612 = vmul.f32 %v607, %v610
    %v614 = vmul.f32 %v595, %v551
    %v615 = vadd.f32 %v612, %v614
    %617 = vrot.lane.b32.xlu0 %v615, 112
    %v618 = vpop.permute.xlu0 %617
    %v619 = vsel %vm281, %v618, 0
    %621 = vmatpush.msra.mxu0 0.0
    %622 = vmatpush.msra.mxu0 0.0
    %623 = vmatpush.msra.mxu0 0.0
    %624 = vmatpush.msra.mxu0 0.0
    %625 = vmatpush.msra.mxu0 0.0
    %626 = vmatpush.msra.mxu0 0.0
    %627 = vmatpush.msra.mxu0 0.0
    %628 = vmatpush.msra.mxu0 0.0
    %629 = vmatpush.msra.mxu0 0.0
    %630 = vmatpush.msra.mxu0 0.0
    %631 = vmatpush.msra.mxu0 0.0
    %632 = vmatpush.msra.mxu0 0.0
    %633 = vmatpush.msra.mxu0 0.0
    %634 = vmatpush.msra.mxu0 0.0
    %635 = vmatpush.msra.mxu0 %v177
    %636 = vmatpush.msra.mxu0 %v176
    %637 = vmatmul.f32.gmra.mxu0 %v619
    %v638 = vpop.f32.mrf.mxu0
    %v639 = vadd.f32 %v279, %v638
    %640 = vdwg.mxu0
    %v642 = vrot.slane %v639, 6
    %v644 = vadd.f32 %v241, %v642
    %v645 = vxor.u32 %v644, 2147483648
    %v646 = vmul.f32 %v645, 1.442695
    %v647 = vpow.pop %v646
    %v648 = vadd.f32 %v647, 1.0
    %v649 = vrcp.pop %v648
    %v650 = vmul.f32 %v648, %v649
    %v651 = vsub.f32 1.0, %v650
    %v652 = vmul.f32 %v649, %v651
    %v653 = vadd.f32 %v649, %v652
    %vm654 = vweird.f32 %v648
    %vm655 = vweird.f32 %v649
    %vm656 = vmor %vm654, %vm655
    %v657 = vsel %vm656, %v649, %v653
    %v658 = vand.u32 2147483647, %v648
    %vm659 = vcmp.eq.f32.partialorder %v658, 8.507059e+37
    %v660 = vand.u32 %v648, 2147483648
    %v661 = vor.u32 1.1754944e-38, %v660
    %v662 = vsel %vm659, %v661, %v657
    %v663 = vmul.f32 1.0, %v662
    %664 = vrot.lane.b32.xlu0 %v642, 96
    %v665 = vpop.permute.xlu0 %664
    %v667 = vmul.f32 %v663, %v665
    %669 = vrot.lane.b32.xlu0 %v667, 32
    %v670 = vpop.permute.xlu0 %669
    %v672 = vadd.f32 %v241, %v670
    %v673 = vtanh.pop %v672
    %v674 = vsub.f32 1.0, %v663
    %676 = vrot.lane.b32.xlu0 %v673, 112
    %v677 = vpop.permute.xlu0 %676
    %v679 = vmul.f32 %v674, %v677
    %v680 = vrot.slane %v615, 6
    %v682 = vmul.f32 %v663, %v680
    %v683 = vadd.f32 %v679, %v682
    %v685 = vrot.slane %v683, 2
    %686 = vrot.lane.b32.xlu0 %v685, 112
    %v687 = vpop.permute.xlu0 %686
    %v688 = vsel %vm281, %v687, 0
    %690 = vmatpush.msra.mxu0 0.0
    %691 = vmatpush.msra.mxu0 0.0
    %692 = vmatpush.msra.mxu0 0.0
    %693 = vmatpush.msra.mxu0 0.0
    %694 = vmatpush.msra.mxu0 0.0
    %695 = vmatpush.msra.mxu0 0.0
    %696 = vmatpush.msra.mxu0 0.0
    %697 = vmatpush.msra.mxu0 0.0
    %698 = vmatpush.msra.mxu0 0.0
    %699 = vmatpush.msra.mxu0 0.0
    %700 = vmatpush.msra.mxu0 0.0
    %701 = vmatpush.msra.mxu0 0.0
    %702 = vmatpush.msra.mxu0 0.0
    %703 = vmatpush.msra.mxu0 0.0
    %704 = vmatpush.msra.mxu0 %v177
    %705 = vmatpush.msra.mxu0 %v176
    %706 = vmatmul.f32.gmra.mxu0 %v688
    %v707 = vpop.f32.mrf.mxu0
    %v708 = vadd.f32 %v279, %v707
    %709 = vdwg.mxu0
    %v711 = vrot.slane %v708, 4
    %v713 = vadd.f32 %v241, %v711
    %v714 = vxor.u32 %v713, 2147483648
    %v715 = vmul.f32 %v714, 1.442695
    %v716 = vpow.pop %v715
    %v717 = vadd.f32 %v716, 1.0
    %v718 = vrcp.pop %v717
    %v719 = vmul.f32 %v717, %v718
    %v720 = vsub.f32 1.0, %v719
    %v721 = vmul.f32 %v718, %v720
    %v722 = vadd.f32 %v718, %v721
    %vm723 = vweird.f32 %v717
    %vm724 = vweird.f32 %v718
    %vm725 = vmor %vm723, %vm724
    %v726 = vsel %vm725, %v718, %v722
    %v727 = vand.u32 2147483647, %v717
    %vm728 = vcmp.eq.f32.partialorder %v727, 8.507059e+37
    %v729 = vand.u32 %v717, 2147483648
    %v730 = vor.u32 1.1754944e-38, %v729
    %v731 = vsel %vm728, %v730, %v726
    %v732 = vmul.f32 1.0, %v731
    %733 = vrot.lane.b32.xlu0 %v711, 96
    %v734 = vpop.permute.xlu0 %733
    %v736 = vmul.f32 %v732, %v734
    %738 = vrot.lane.b32.xlu0 %v736, 32
    %v739 = vpop.permute.xlu0 %738
    %v741 = vadd.f32 %v241, %v739
    %v742 = vtanh.pop %v741
    %v743 = vsub.f32 1.0, %v732
    %745 = vrot.lane.b32.xlu0 %v742, 112
    %v746 = vpop.permute.xlu0 %745
    %v748 = vmul.f32 %v743, %v746
    %v749 = vrot.slane %v683, 6
    %v751 = vmul.f32 %v732, %v749
    %v752 = vadd.f32 %v748, %v751
    %v754 = vrot.slane %v752, 4
    %755 = vrot.lane.b32.xlu0 %v754, 112
    %v756 = vpop.permute.xlu0 %755
    %v757 = vsel %vm281, %v756, 0
    %759 = vmatpush.msra.mxu0 0.0
    %760 = vmatpush.msra.mxu0 0.0
    %761 = vmatpush.msra.mxu0 0.0
    %762 = vmatpush.msra.mxu0 0.0
    %763 = vmatpush.msra.mxu0 0.0
    %764 = vmatpush.msra.mxu0 0.0
    %765 = vmatpush.msra.mxu0 0.0
    %766 = vmatpush.msra.mxu0 0.0
    %767 = vmatpush.msra.mxu0 0.0
    %768 = vmatpush.msra.mxu0 0.0
    %769 = vmatpush.msra.mxu0 0.0
    %770 = vmatpush.msra.mxu0 0.0
    %771 = vmatpush.msra.mxu0 0.0
    %772 = vmatpush.msra.mxu0 0.0
    %773 = vmatpush.msra.mxu0 %v177
    %774 = vmatpush.msra.mxu0 %v176
    %775 = vmatmul.f32.gmra.mxu0 %v757
    %v776 = vpop.f32.mrf.mxu0
    %v777 = vadd.f32 %v279, %v776
    %778 = vdwg.mxu0
    %v780 = vrot.slane %v777, 2
    %v782 = vadd.f32 %v241, %v780
    %v783 = vxor.u32 %v782, 2147483648
    %v784 = vmul.f32 %v783, 1.442695
    %v785 = vpow.pop %v784
    %v786 = vadd.f32 %v785, 1.0
    %v787 = vrcp.pop %v786
    %v788 = vmul.f32 %v786, %v787
    %v789 = vsub.f32 1.0, %v788
    %v790 = vmul.f32 %v787, %v789
    %v791 = vadd.f32 %v787, %v790
    %vm792 = vweird.f32 %v786
    %vm793 = vweird.f32 %v787
    %vm794 = vmor %vm792, %vm793
    %v795 = vsel %vm794, %v787, %v791
    %v796 = vand.u32 2147483647, %v786
    %vm797 = vcmp.eq.f32.partialorder %v796, 8.507059e+37
    %v798 = vand.u32 %v786, 2147483648
    %v799 = vor.u32 1.1754944e-38, %v798
    %v800 = vsel %vm797, %v799, %v795
    %v801 = vmul.f32 1.0, %v800
    %802 = vrot.lane.b32.xlu0 %v780, 96
    %v803 = vpop.permute.xlu0 %802
    %v805 = vmul.f32 %v801, %v803
    %807 = vrot.lane.b32.xlu0 %v805, 32
    %v808 = vpop.permute.xlu0 %807
    %v810 = vadd.f32 %v241, %v808
    %v811 = vtanh.pop %v810
    %v812 = vsub.f32 1.0, %v801
    %814 = vrot.lane.b32.xlu0 %v811, 112
    %v815 = vpop.permute.xlu0 %814
    %v817 = vmul.f32 %v812, %v815
    %v818 = vrot.slane %v752, 6
    %v820 = vmul.f32 %v801, %v818
    %v821 = vadd.f32 %v817, %v820
    %v823 = vrot.slane %v821, 6
    %824 = vrot.lane.b32.xlu0 %v823, 112
    %v825 = vpop.permute.xlu0 %824
    %v826 = vsel %vm281, %v825, 0
    %828 = vmatpush.msra.mxu0 0.0
    %829 = vmatpush.msra.mxu0 0.0
    %830 = vmatpush.msra.mxu0 0.0
    %831 = vmatpush.msra.mxu0 0.0
    %832 = vmatpush.msra.mxu0 0.0
    %833 = vmatpush.msra.mxu0 0.0
    %834 = vmatpush.msra.mxu0 0.0
    %835 = vmatpush.msra.mxu0 0.0
    %836 = vmatpush.msra.mxu0 0.0
    %837 = vmatpush.msra.mxu0 0.0
    %838 = vmatpush.msra.mxu0 0.0
    %839 = vmatpush.msra.mxu0 0.0
    %840 = vmatpush.msra.mxu0 0.0
    %841 = vmatpush.msra.mxu0 0.0
    %842 = vmatpush.msra.mxu0 %v177
    %843 = vmatpush.msra.mxu0 %v176
    %844 = vmatmul.f32.gmra.mxu0 %v826
    %v845 = vpop.f32.mrf.mxu0
    %v846 = vadd.f32 %v279, %v845
    %847 = vdwg.mxu0
    %v848 = vadd.f32 %v244, %v846
    %v849 = vxor.u32 %v848, 2147483648
    %v850 = vmul.f32 %v849, 1.442695
    %v851 = vpow.pop %v850
    %v852 = vadd.f32 %v851, 1.0
    %v853 = vrcp.pop %v852
    %v854 = vmul.f32 %v852, %v853
    %v855 = vsub.f32 1.0, %v854
    %v856 = vmul.f32 %v853, %v855
    %v857 = vadd.f32 %v853, %v856
    %vm858 = vweird.f32 %v852
    %vm859 = vweird.f32 %v853
    %vm860 = vmor %vm858, %vm859
    %v861 = vsel %vm860, %v853, %v857
    %v862 = vand.u32 2147483647, %v852
    %vm863 = vcmp.eq.f32.partialorder %v862, 8.507059e+37
    %v864 = vand.u32 %v852, 2147483648
    %v865 = vor.u32 1.1754944e-38, %v864
    %v866 = vsel %vm863, %v865, %v861
    %v867 = vmul.f32 1.0, %v866
    %869 = vrot.lane.b32.xlu0 %v846, 96
    %v870 = vpop.permute.xlu0 %869
    %v872 = vmul.f32 %v867, %v870
    %874 = vrot.lane.b32.xlu0 %v872, 32
    %v875 = vpop.permute.xlu0 %874
    %v877 = vadd.f32 %v244, %v875
    %v878 = vtanh.pop %v877
    %v879 = vsub.f32 1.0, %v867
    %881 = vrot.lane.b32.xlu0 %v878, 112
    %v882 = vpop.permute.xlu0 %881
    %v884 = vmul.f32 %v879, %v882
    %v886 = vmul.f32 %v867, %v823
    %v887 = vadd.f32 %v884, %v886
    %889 = vrot.lane.b32.xlu0 %v887, 112
    %v890 = vpop.permute.xlu0 %889
    %v891 = vsel %vm281, %v890, 0
    %893 = vmatpush.msra.mxu0 0.0
    %894 = vmatpush.msra.mxu0 0.0
    %895 = vmatpush.msra.mxu0 0.0
    %896 = vmatpush.msra.mxu0 0.0
    %897 = vmatpush.msra.mxu0 0.0
    %898 = vmatpush.msra.mxu0 0.0
    %899 = vmatpush.msra.mxu0 0.0
    %900 = vmatpush.msra.mxu0 0.0
    %901 = vmatpush.msra.mxu0 0.0
    %902 = vmatpush.msra.mxu0 0.0
    %903 = vmatpush.msra.mxu0 0.0
    %904 = vmatpush.msra.mxu0 0.0
    %905 = vmatpush.msra.mxu0 0.0
    %906 = vmatpush.msra.mxu0 0.0
    %907 = vmatpush.msra.mxu0 %v177
    %908 = vmatpush.msra.mxu0 %v176
    %909 = vmatmul.f32.gmra.mxu0 %v891
    %v910 = vpop.f32.mrf.mxu0
    %v911 = vadd.f32 %v279, %v910
    %912 = vdwg.mxu0
    %v914 = vrot.slane %v911, 6
    %v916 = vadd.f32 %v244, %v914
    %v917 = vxor.u32 %v916, 2147483648
    %v918 = vmul.f32 %v917, 1.442695
    %v919 = vpow.pop %v918
    %v920 = vadd.f32 %v919, 1.0
    %v921 = vrcp.pop %v920
    %v922 = vmul.f32 %v920, %v921
    %v923 = vsub.f32 1.0, %v922
    %v924 = vmul.f32 %v921, %v923
    %v925 = vadd.f32 %v921, %v924
    %vm926 = vweird.f32 %v920
    %vm927 = vweird.f32 %v921
    %vm928 = vmor %vm926, %vm927
    %v929 = vsel %vm928, %v921, %v925
    %v930 = vand.u32 2147483647, %v920
    %vm931 = vcmp.eq.f32.partialorder %v930, 8.507059e+37
    %v932 = vand.u32 %v920, 2147483648
    %v933 = vor.u32 1.1754944e-38, %v932
    %v934 = vsel %vm931, %v933, %v929
    %v935 = vmul.f32 1.0, %v934
    %936 = vrot.lane.b32.xlu0 %v914, 96
    %v937 = vpop.permute.xlu0 %936
    %v939 = vmul.f32 %v935, %v937
    %941 = vrot.lane.b32.xlu0 %v939, 32
    %v942 = vpop.permute.xlu0 %941
    %v944 = vadd.f32 %v244, %v942
    %v945 = vtanh.pop %v944
    %v946 = vsub.f32 1.0, %v935
    %948 = vrot.lane.b32.xlu0 %v945, 112
    %v949 = vpop.permute.xlu0 %948
    %v951 = vmul.f32 %v946, %v949
    %v952 = vrot.slane %v887, 6
    %v954 = vmul.f32 %v935, %v952
    %v955 = vadd.f32 %v951, %v954
    %v957 = vrot.slane %v955, 2
    %958 = vrot.lane.b32.xlu0 %v957, 112
    %v959 = vpop.permute.xlu0 %958
    %v960 = vsel %vm281, %v959, 0
    %962 = vmatpush.msra.mxu0 0.0
    %963 = vmatpush.msra.mxu0 0.0
    %964 = vmatpush.msra.mxu0 0.0
    %965 = vmatpush.msra.mxu0 0.0
    %966 = vmatpush.msra.mxu0 0.0
    %967 = vmatpush.msra.mxu0 0.0
    %968 = vmatpush.msra.mxu0 0.0
    %969 = vmatpush.msra.mxu0 0.0
    %970 = vmatpush.msra.mxu0 0.0
    %971 = vmatpush.msra.mxu0 0.0
    %972 = vmatpush.msra.mxu0 0.0
    %973 = vmatpush.msra.mxu0 0.0
    %974 = vmatpush.msra.mxu0 0.0
    %975 = vmatpush.msra.mxu0 0.0
    %976 = vmatpush.msra.mxu0 %v177
    %977 = vmatpush.msra.mxu0 %v176
    %978 = vmatmul.f32.gmra.mxu0 %v960
    %v979 = vpop.f32.mrf.mxu0
    %v980 = vadd.f32 %v279, %v979
    %981 = vdwg.mxu0
    %v983 = vrot.slane %v980, 4
    %v985 = vadd.f32 %v244, %v983
    %v986 = vxor.u32 %v985, 2147483648
    %v987 = vmul.f32 %v986, 1.442695
    %v988 = vpow.pop %v987
    %v989 = vadd.f32 %v988, 1.0
    %v990 = vrcp.pop %v989
    %v991 = vmul.f32 %v989, %v990
    %v992 = vsub.f32 1.0, %v991
    %v993 = vmul.f32 %v990, %v992
    %v994 = vadd.f32 %v990, %v993
    %vm995 = vweird.f32 %v989
    %vm996 = vweird.f32 %v990
    %vm997 = vmor %vm995, %vm996
    %v998 = vsel %vm997, %v990, %v994
    %v999 = vand.u32 2147483647, %v989
    %vm1000 = vcmp.eq.f32.partialorder %v999, 8.507059e+37
    %v1001 = vand.u32 %v989, 2147483648
    %v1002 = vor.u32 1.1754944e-38, %v1001
    %v1003 = vsel %vm1000, %v1002, %v998
    %v1004 = vmul.f32 1.0, %v1003
    %1005 = vrot.lane.b32.xlu0 %v983, 96
    %v1006 = vpop.permute.xlu0 %1005
    %v1008 = vmul.f32 %v1004, %v1006
    %1010 = vrot.lane.b32.xlu0 %v1008, 32
    %v1011 = vpop.permute.xlu0 %1010
    %v1013 = vadd.f32 %v244, %v1011
    %v1014 = vtanh.pop %v1013
    %v1015 = vsub.f32 1.0, %v1004
    %1017 = vrot.lane.b32.xlu0 %v1014, 112
    %v1018 = vpop.permute.xlu0 %1017
    %v1020 = vmul.f32 %v1015, %v1018
    %v1021 = vrot.slane %v955, 6
    %v1023 = vmul.f32 %v1004, %v1021
    %v1024 = vadd.f32 %v1020, %v1023
    %v1026 = vrot.slane %v1024, 4
    %1027 = vrot.lane.b32.xlu0 %v1026, 112
    %v1028 = vpop.permute.xlu0 %1027
    %v1029 = vsel %vm281, %v1028, 0
    %1031 = vmatpush.msra.mxu0 0.0
    %1032 = vmatpush.msra.mxu0 0.0
    %1033 = vmatpush.msra.mxu0 0.0
    %1034 = vmatpush.msra.mxu0 0.0
    %1035 = vmatpush.msra.mxu0 0.0
    %1036 = vmatpush.msra.mxu0 0.0
    %1037 = vmatpush.msra.mxu0 0.0
    %1038 = vmatpush.msra.mxu0 0.0
    %1039 = vmatpush.msra.mxu0 0.0
    %1040 = vmatpush.msra.mxu0 0.0
    %1041 = vmatpush.msra.mxu0 0.0
    %1042 = vmatpush.msra.mxu0 0.0
    %1043 = vmatpush.msra.mxu0 0.0
    %1044 = vmatpush.msra.mxu0 0.0
    %1045 = vmatpush.msra.mxu0 %v177
    %1046 = vmatpush.msra.mxu0 %v176
    %1047 = vmatmul.f32.gmra.mxu0 %v1029
    %v1048 = vpop.f32.mrf.mxu0
    %v1049 = vadd.f32 %v279, %v1048
    %1050 = vdwg.mxu0
    %v1052 = vrot.slane %v1049, 2
    %v1054 = vadd.f32 %v244, %v1052
    %v1055 = vxor.u32 %v1054, 2147483648
    %v1056 = vmul.f32 %v1055, 1.442695
    %v1057 = vpow.pop %v1056
    %v1058 = vadd.f32 %v1057, 1.0
    %v1059 = vrcp.pop %v1058
    %v1060 = vmul.f32 %v1058, %v1059
    %v1061 = vsub.f32 1.0, %v1060
    %v1062 = vmul.f32 %v1059, %v1061
    %v1063 = vadd.f32 %v1059, %v1062
    %vm1064 = vweird.f32 %v1058
    %vm1065 = vweird.f32 %v1059
    %vm1066 = vmor %vm1064, %vm1065
    %v1067 = vsel %vm1066, %v1059, %v1063
    %v1068 = vand.u32 2147483647, %v1058
    %vm1069 = vcmp.eq.f32.partialorder %v1068, 8.507059e+37
    %v1070 = vand.u32 %v1058, 2147483648
    %v1071 = vor.u32 1.1754944e-38, %v1070
    %v1072 = vsel %vm1069, %v1071, %v1067
    %v1073 = vmul.f32 1.0, %v1072
    %1074 = vrot.lane.b32.xlu0 %v1052, 96
    %v1075 = vpop.permute.xlu0 %1074
    %v1077 = vmul.f32 %v1073, %v1075
    %1079 = vrot.lane.b32.xlu0 %v1077, 32
    %v1080 = vpop.permute.xlu0 %1079
    %v1082 = vadd.f32 %v244, %v1080
    %v1083 = vtanh.pop %v1082
    %v1084 = vsub.f32 1.0, %v1073
    %1086 = vrot.lane.b32.xlu0 %v1083, 112
    %v1087 = vpop.permute.xlu0 %1086
    %v1089 = vmul.f32 %v1084, %v1087
    %v1090 = vrot.slane %v1024, 6
    %v1092 = vmul.f32 %v1073, %v1090
    %v1093 = vadd.f32 %v1089, %v1092
    %v1095 = vrot.slane %v1093, 6
    %1096 = vrot.lane.b32.xlu0 %v1095, 112
    %v1097 = vpop.permute.xlu0 %1096
    %v1098 = vsel %vm281, %v1097, 0
    %1100 = vmatpush.msra.mxu0 0.0
    %1101 = vmatpush.msra.mxu0 0.0
    %1102 = vmatpush.msra.mxu0 0.0
    %1103 = vmatpush.msra.mxu0 0.0
    %1104 = vmatpush.msra.mxu0 0.0
    %1105 = vmatpush.msra.mxu0 0.0
    %1106 = vmatpush.msra.mxu0 0.0
    %1107 = vmatpush.msra.mxu0 0.0
    %1108 = vmatpush.msra.mxu0 0.0
    %1109 = vmatpush.msra.mxu0 0.0
    %1110 = vmatpush.msra.mxu0 0.0
    %1111 = vmatpush.msra.mxu0 0.0
    %1112 = vmatpush.msra.mxu0 0.0
    %1113 = vmatpush.msra.mxu0 0.0
    %1114 = vmatpush.msra.mxu0 %v177
    %1115 = vmatpush.msra.mxu0 %v176
    %1116 = vmatmul.f32.gmra.mxu0 %v1098
    %v1117 = vpop.f32.mrf.mxu0
    %v1118 = vadd.f32 %v279, %v1117
    %1119 = vdwg.mxu0
    %v1120 = vadd.f32 %v247, %v1118
    %v1121 = vxor.u32 %v1120, 2147483648
    %v1122 = vmul.f32 %v1121, 1.442695
    %v1123 = vpow.pop %v1122
    %v1124 = vadd.f32 %v1123, 1.0
    %v1125 = vrcp.pop %v1124
    %v1126 = vmul.f32 %v1124, %v1125
    %v1127 = vsub.f32 1.0, %v1126
    %v1128 = vmul.f32 %v1125, %v1127
    %v1129 = vadd.f32 %v1125, %v1128
    %vm1130 = vweird.f32 %v1124
    %vm1131 = vweird.f32 %v1125
    %vm1132 = vmor %vm1130, %vm1131
    %v1133 = vsel %vm1132, %v1125, %v1129
    %v1134 = vand.u32 2147483647, %v1124
    %vm1135 = vcmp.eq.f32.partialorder %v1134, 8.507059e+37
    %v1136 = vand.u32 %v1124, 2147483648
    %v1137 = vor.u32 1.1754944e-38, %v1136
    %v1138 = vsel %vm1135, %v1137, %v1133
    %v1139 = vmul.f32 1.0, %v1138
    %1141 = vrot.lane.b32.xlu0 %v1118, 96
    %v1142 = vpop.permute.xlu0 %1141
    %v1144 = vmul.f32 %v1139, %v1142
    %1146 = vrot.lane.b32.xlu0 %v1144, 32
    %v1147 = vpop.permute.xlu0 %1146
    %v1149 = vadd.f32 %v247, %v1147
    %v1150 = vtanh.pop %v1149
    %v1151 = vsub.f32 1.0, %v1139
    %1153 = vrot.lane.b32.xlu0 %v1150, 112
    %v1154 = vpop.permute.xlu0 %1153
    %v1156 = vmul.f32 %v1151, %v1154
    %v1158 = vmul.f32 %v1139, %v1095
    %v1159 = vadd.f32 %v1156, %v1158
    %1161 = vrot.lane.b32.xlu0 %v1159, 112
    %v1162 = vpop.permute.xlu0 %1161
    %v1163 = vsel %vm281, %v1162, 0
    %1165 = vmatpush.msra.mxu0 0.0
    %1166 = vmatpush.msra.mxu0 0.0
    %1167 = vmatpush.msra.mxu0 0.0
    %1168 = vmatpush.msra.mxu0 0.0
    %1169 = vmatpush.msra.mxu0 0.0
    %1170 = vmatpush.msra.mxu0 0.0
    %1171 = vmatpush.msra.mxu0 0.0
    %1172 = vmatpush.msra.mxu0 0.0
    %1173 = vmatpush.msra.mxu0 0.0
    %1174 = vmatpush.msra.mxu0 0.0
    %1175 = vmatpush.msra.mxu0 0.0
    %1176 = vmatpush.msra.mxu0 0.0
    %1177 = vmatpush.msra.mxu0 0.0
    %1178 = vmatpush.msra.mxu0 0.0
    %1179 = vmatpush.msra.mxu0 %v177
    %1180 = vmatpush.msra.mxu0 %v176
    %1181 = vmatmul.f32.gmra.mxu0 %v1163
    %v1182 = vpop.f32.mrf.mxu0
    %v1183 = vadd.f32 %v279, %v1182
    %1184 = vdwg.mxu0
    %v1186 = vrot.slane %v1183, 6
    %v1188 = vadd.f32 %v247, %v1186
    %v1189 = vxor.u32 %v1188, 2147483648
    %v1190 = vmul.f32 %v1189, 1.442695
    %v1191 = vpow.pop %v1190
    %v1192 = vadd.f32 %v1191, 1.0
    %v1193 = vrcp.pop %v1192
    %v1194 = vmul.f32 %v1192, %v1193
    %v1195 = vsub.f32 1.0, %v1194
    %v1196 = vmul.f32 %v1193, %v1195
    %v1197 = vadd.f32 %v1193, %v1196
    %vm1198 = vweird.f32 %v1192
    %vm1199 = vweird.f32 %v1193
    %vm1200 = vmor %vm1198, %vm1199
    %v1201 = vsel %vm1200, %v1193, %v1197
    %v1202 = vand.u32 2147483647, %v1192
    %vm1203 = vcmp.eq.f32.partialorder %v1202, 8.507059e+37
    %v1204 = vand.u32 %v1192, 2147483648
    %v1205 = vor.u32 1.1754944e-38, %v1204
    %v1206 = vsel %vm1203, %v1205, %v1201
    %v1207 = vmul.f32 1.0, %v1206
    %1208 = vrot.lane.b32.xlu0 %v1186, 96
    %v1209 = vpop.permute.xlu0 %1208
    %v1211 = vmul.f32 %v1207, %v1209
    %1213 = vrot.lane.b32.xlu0 %v1211, 32
    %v1214 = vpop.permute.xlu0 %1213
    %v1216 = vadd.f32 %v247, %v1214
    %v1217 = vtanh.pop %v1216
    %v1218 = vsub.f32 1.0, %v1207
    %1220 = vrot.lane.b32.xlu0 %v1217, 112
    %v1221 = vpop.permute.xlu0 %1220
    %v1223 = vmul.f32 %v1218, %v1221
    %v1224 = vrot.slane %v1159, 6
    %v1226 = vmul.f32 %v1207, %v1224
    %v1227 = vadd.f32 %v1223, %v1226
    %v1229 = vrot.slane %v1227, 2
    %1230 = vrot.lane.b32.xlu0 %v1229, 112
    %v1231 = vpop.permute.xlu0 %1230
    %v1232 = vsel %vm281, %v1231, 0
    %1234 = vmatpush.msra.mxu0 0.0
    %1235 = vmatpush.msra.mxu0 0.0
    %1236 = vmatpush.msra.mxu0 0.0
    %1237 = vmatpush.msra.mxu0 0.0
    %1238 = vmatpush.msra.mxu0 0.0
    %1239 = vmatpush.msra.mxu0 0.0
    %1240 = vmatpush.msra.mxu0 0.0
    %1241 = vmatpush.msra.mxu0 0.0
    %1242 = vmatpush.msra.mxu0 0.0
    %1243 = vmatpush.msra.mxu0 0.0
    %1244 = vmatpush.msra.mxu0 0.0
    %1245 = vmatpush.msra.mxu0 0.0
    %1246 = vmatpush.msra.mxu0 0.0
    %1247 = vmatpush.msra.mxu0 0.0
    %1248 = vmatpush.msra.mxu0 %v177
    %1249 = vmatpush.msra.mxu0 %v176
    %1250 = vmatmul.f32.gmra.mxu0 %v1232
    %v1251 = vpop.f32.mrf.mxu0
    %v1252 = vadd.f32 %v279, %v1251
    %1253 = vdwg.mxu0
    %v1255 = vrot.slane %v1252, 4
    %v1257 = vadd.f32 %v247, %v1255
    %v1258 = vxor.u32 %v1257, 2147483648
    %v1259 = vmul.f32 %v1258, 1.442695
    %v1260 = vpow.pop %v1259
    %v1261 = vadd.f32 %v1260, 1.0
    %v1262 = vrcp.pop %v1261
    %v1263 = vmul.f32 %v1261, %v1262
    %v1264 = vsub.f32 1.0, %v1263
    %v1265 = vmul.f32 %v1262, %v1264
    %v1266 = vadd.f32 %v1262, %v1265
    %vm1267 = vweird.f32 %v1261
    %vm1268 = vweird.f32 %v1262
    %vm1269 = vmor %vm1267, %vm1268
    %v1270 = vsel %vm1269, %v1262, %v1266
    %v1271 = vand.u32 2147483647, %v1261
    %vm1272 = vcmp.eq.f32.partialorder %v1271, 8.507059e+37
    %v1273 = vand.u32 %v1261, 2147483648
    %v1274 = vor.u32 1.1754944e-38, %v1273
    %v1275 = vsel %vm1272, %v1274, %v1270
    %v1276 = vmul.f32 1.0, %v1275
    %1277 = vrot.lane.b32.xlu0 %v1255, 96
    %v1278 = vpop.permute.xlu0 %1277
    %v1280 = vmul.f32 %v1276, %v1278
    %1282 = vrot.lane.b32.xlu0 %v1280, 32
    %v1283 = vpop.permute.xlu0 %1282
    %v1285 = vadd.f32 %v247, %v1283
    %v1286 = vtanh.pop %v1285
    %v1287 = vsub.f32 1.0, %v1276
    %1289 = vrot.lane.b32.xlu0 %v1286, 112
    %v1290 = vpop.permute.xlu0 %1289
    %v1292 = vmul.f32 %v1287, %v1290
    %v1293 = vrot.slane %v1227, 6
    %v1295 = vmul.f32 %v1276, %v1293
    %v1296 = vadd.f32 %v1292, %v1295
    %v1298 = vrot.slane %v1296, 4
    %1299 = vrot.lane.b32.xlu0 %v1298, 112
    %v1300 = vpop.permute.xlu0 %1299
    %v1301 = vsel %vm281, %v1300, 0
    %1303 = vmatpush.msra.mxu0 0.0
    %1304 = vmatpush.msra.mxu0 0.0
    %1305 = vmatpush.msra.mxu0 0.0
    %1306 = vmatpush.msra.mxu0 0.0
    %1307 = vmatpush.msra.mxu0 0.0
    %1308 = vmatpush.msra.mxu0 0.0
    %1309 = vmatpush.msra.mxu0 0.0
    %1310 = vmatpush.msra.mxu0 0.0
    %1311 = vmatpush.msra.mxu0 0.0
    %1312 = vmatpush.msra.mxu0 0.0
    %1313 = vmatpush.msra.mxu0 0.0
    %1314 = vmatpush.msra.mxu0 0.0
    %1315 = vmatpush.msra.mxu0 0.0
    %1316 = vmatpush.msra.mxu0 0.0
    %1317 = vmatpush.msra.mxu0 %v177
    %1318 = vmatpush.msra.mxu0 %v176
    %1319 = vmatmul.f32.gmra.mxu0 %v1301
    %v1320 = vpop.f32.mrf.mxu0
    %v1321 = vadd.f32 %v279, %v1320
    %1322 = vdwg.mxu0
    %v1324 = vrot.slane %v1321, 2
    %v1326 = vadd.f32 %v247, %v1324
    %v1327 = vxor.u32 %v1326, 2147483648
    %v1328 = vmul.f32 %v1327, 1.442695
    %v1329 = vpow.pop %v1328
    %v1330 = vadd.f32 %v1329, 1.0
    %v1331 = vrcp.pop %v1330
    %v1332 = vmul.f32 %v1330, %v1331
    %v1333 = vsub.f32 1.0, %v1332
    %v1334 = vmul.f32 %v1331, %v1333
    %v1335 = vadd.f32 %v1331, %v1334
    %vm1336 = vweird.f32 %v1330
    %vm1337 = vweird.f32 %v1331
    %vm1338 = vmor %vm1336, %vm1337
    %v1339 = vsel %vm1338, %v1331, %v1335
    %v1340 = vand.u32 2147483647, %v1330
    %vm1341 = vcmp.eq.f32.partialorder %v1340, 8.507059e+37
    %v1342 = vand.u32 %v1330, 2147483648
    %v1343 = vor.u32 1.1754944e-38, %v1342
    %v1344 = vsel %vm1341, %v1343, %v1339
    %v1345 = vmul.f32 1.0, %v1344
    %1346 = vrot.lane.b32.xlu0 %v1324, 96
    %v1347 = vpop.permute.xlu0 %1346
    %v1349 = vmul.f32 %v1345, %v1347
    %1351 = vrot.lane.b32.xlu0 %v1349, 32
    %v1352 = vpop.permute.xlu0 %1351
    %v1354 = vadd.f32 %v247, %v1352
    %v1355 = vtanh.pop %v1354
    %v1356 = vsub.f32 1.0, %v1345
    %1358 = vrot.lane.b32.xlu0 %v1355, 112
    %v1359 = vpop.permute.xlu0 %1358
    %v1361 = vmul.f32 %v1356, %v1359
    %v1362 = vrot.slane %v1296, 6
    %v1364 = vmul.f32 %v1345, %v1362
    %v1365 = vadd.f32 %v1361, %v1364
    %v1367 = vperm.slane %v184, 0
    %1369 = vmatpush.msra.mxu0 0.0
    %1370 = vmatpush.msra.mxu0 0.0
    %1371 = vmatpush.msra.mxu0 0.0
    %1372 = vmatpush.msra.mxu0 0.0
    %1373 = vmatpush.msra.mxu0 0.0
    %1374 = vmatpush.msra.mxu0 0.0
    %1375 = vmatpush.msra.mxu0 0.0
    %1376 = vmatpush.msra.mxu0 0.0
    %1377 = vmatpush.msra.mxu0 0.0
    %1378 = vmatpush.msra.mxu0 0.0
    %1379 = vmatpush.msra.mxu0 0.0
    %1380 = vmatpush.msra.mxu0 0.0
    %1381 = vmatpush.msra.mxu0 0.0
    %1382 = vmatpush.msra.mxu0 0.0
    %1383 = vmatpush.msra.mxu0 %v182
    %1384 = vmatpush.msra.mxu0 %v181
    %1385 = vmatmul.f32.gmra.mxu0 %v283
    %v1386 = vpop.f32.mrf.mxu0
    %v1387 = vadd.f32 %v1367, %v1386
    %1388 = vdwg.mxu0
    %v1390 = vrot.slane %v1387, 2
    %v1392 = vadd.f32 %v276, %v1390
    %v1393 = vxor.u32 %v1392, 2147483648
    %v1394 = vmul.f32 %v1393, 1.442695
    %v1395 = vpow.pop %v1394
    %v1396 = vadd.f32 %v1395, 1.0
    %v1397 = vrcp.pop %v1396
    %v1398 = vmul.f32 %v1396, %v1397
    %v1399 = vsub.f32 1.0, %v1398
    %v1400 = vmul.f32 %v1397, %v1399
    %v1401 = vadd.f32 %v1397, %v1400
    %vm1402 = vweird.f32 %v1396
    %vm1403 = vweird.f32 %v1397
    %vm1404 = vmor %vm1402, %vm1403
    %v1405 = vsel %vm1404, %v1397, %v1401
    %v1406 = vand.u32 2147483647, %v1396
    %vm1407 = vcmp.eq.f32.partialorder %v1406, 8.507059e+37
    %v1408 = vand.u32 %v1396, 2147483648
    %v1409 = vor.u32 1.1754944e-38, %v1408
    %v1410 = vsel %vm1407, %v1409, %v1405
    %v1411 = vmul.f32 1.0, %v1410
    %1412 = vrot.lane.b32.xlu0 %v1390, 96
    %v1413 = vpop.permute.xlu0 %1412
    %v1415 = vmul.f32 %v1411, %v1413
    %1417 = vrot.lane.b32.xlu0 %v1415, 32
    %v1418 = vpop.permute.xlu0 %1417
    %v1420 = vadd.f32 %v276, %v1418
    %v1421 = vtanh.pop %v1420
    %v1422 = vsub.f32 1.0, %v1411
    %1424 = vrot.lane.b32.xlu0 %v1421, 112
    %v1425 = vpop.permute.xlu0 %1424
    %v1427 = vmul.f32 %v1422, %v1425
    %v1428 = vmul.f32 %v1411, 0.0
    %v1429 = vadd.f32 %v1427, %v1428
    %1431 = vrot.lane.b32.xlu0 %v1365, 112
    %v1432 = vpop.permute.xlu0 %1431
    %v1434 = vsel %vm281, %v1432, %v1429
    %v1436 = vperm.slane %v193, 0
    %v1439 = vrot.slane %v1434, 6
    %vm1440 = vcmask 261120
    %v1441 = vsel %vm1440, %v1439, 0
    %1443 = vmatpush.msra.mxu0 0.0
    %1444 = vmatpush.msra.mxu0 0.0
    %1445 = vmatpush.msra.mxu0 0.0
    %1446 = vmatpush.msra.mxu0 0.0
    %1447 = vmatpush.msra.mxu0 0.0
    %1448 = vmatpush.msra.mxu0 0.0
    %1449 = vmatpush.msra.mxu0 0.0
    %1450 = vmatpush.msra.mxu0 0.0
    %1451 = vmatpush.msra.mxu0 0.0
    %1452 = vmatpush.msra.mxu0 0.0
    %1453 = vmatpush.msra.mxu0 0.0
    %1454 = vmatpush.msra.mxu0 0.0
    %1455 = vmatpush.msra.mxu0 %v188
    %1456 = vmatpush.msra.mxu0 %v187
    %1457 = vmatpush.msra.mxu0 %v186
    %1458 = vmatpush.msra.mxu0 %v185
    %1459 = vmatmul.f32.gmra.mxu0 %v1441
    %v1460 = vpop.f32.mrf.mxu0
    %v1461 = vadd.f32 %v1436, %v1460
    %1462 = vdwg.mxu0
    %v1464 = vperm.slane %v194, 0
    %v1466 = vsel %vm1440, 0.0, 0
    %1468 = vmatpush.msra.mxu0 0.0
    %1469 = vmatpush.msra.mxu0 0.0
    %1470 = vmatpush.msra.mxu0 0.0
    %1471 = vmatpush.msra.mxu0 0.0
    %1472 = vmatpush.msra.mxu0 0.0
    %1473 = vmatpush.msra.mxu0 0.0
    %1474 = vmatpush.msra.mxu0 0.0
    %1475 = vmatpush.msra.mxu0 0.0
    %1476 = vmatpush.msra.mxu0 0.0
    %1477 = vmatpush.msra.mxu0 0.0
    %1478 = vmatpush.msra.mxu0 0.0
    %1479 = vmatpush.msra.mxu0 0.0
    %1480 = vmatpush.msra.mxu0 %v192
    %1481 = vmatpush.msra.mxu0 %v191
    %1482 = vmatpush.msra.mxu0 %v190
    %1483 = vmatpush.msra.mxu0 %v189
    %1484 = vmatmul.f32.gmra.mxu0 %v1466
    %v1485 = vpop.f32.mrf.mxu0
    %v1486 = vadd.f32 %v1464, %v1485
    %1487 = vdwg.mxu0
    %v1488 = vadd.f32 %v1461, %v1486
    %v1489 = vxor.u32 %v1488, 2147483648
    %v1490 = vmul.f32 %v1489, 1.442695
    %v1491 = vpow.pop %v1490
    %v1492 = vadd.f32 %v1491, 1.0
    %v1493 = vrcp.pop %v1492
    %v1494 = vmul.f32 %v1492, %v1493
    %v1495 = vsub.f32 1.0, %v1494
    %v1496 = vmul.f32 %v1493, %v1495
    %v1497 = vadd.f32 %v1493, %v1496
    %vm1498 = vweird.f32 %v1492
    %vm1499 = vweird.f32 %v1493
    %vm1500 = vmor %vm1498, %vm1499
    %v1501 = vsel %vm1500, %v1493, %v1497
    %v1502 = vand.u32 2147483647, %v1492
    %vm1503 = vcmp.eq.f32.partialorder %v1502, 8.507059e+37
    %v1504 = vand.u32 %v1492, 2147483648
    %v1505 = vor.u32 1.1754944e-38, %v1504
    %v1506 = vsel %vm1503, %v1505, %v1501
    %v1507 = vmul.f32 1.0, %v1506
    %1509 = vrot.lane.b32.xlu0 %v1486, 64
    %v1510 = vpop.permute.xlu0 %1509
    %v1512 = vmul.f32 %v1507, %v1510
    %1514 = vrot.lane.b32.xlu0 %v1512, 64
    %v1515 = vpop.permute.xlu0 %1514
    %v1517 = vadd.f32 %v1461, %v1515
    %v1518 = vtanh.pop %v1517
    %v1519 = vsub.f32 1.0, %v1507
    %1521 = vrot.lane.b32.xlu0 %v1518, 96
    %v1522 = vpop.permute.xlu0 %1521
    %v1524 = vmul.f32 %v1519, %v1522
    %v1525 = vmul.f32 %v1507, 0.0
    %v1526 = vadd.f32 %v1524, %v1525
    %1528 = vrot.lane.b32.xlu0 %v1526, 96
    %v1529 = vpop.permute.xlu0 %1528
    %v1530 = vsel %vm1440, %v1529, 0
    %1532 = vmatpush.msra.mxu0 0.0
    %1533 = vmatpush.msra.mxu0 0.0
    %1534 = vmatpush.msra.mxu0 0.0
    %1535 = vmatpush.msra.mxu0 0.0
    %1536 = vmatpush.msra.mxu0 0.0
    %1537 = vmatpush.msra.mxu0 0.0
    %1538 = vmatpush.msra.mxu0 0.0
    %1539 = vmatpush.msra.mxu0 0.0
    %1540 = vmatpush.msra.mxu0 0.0
    %1541 = vmatpush.msra.mxu0 0.0
    %1542 = vmatpush.msra.mxu0 0.0
    %1543 = vmatpush.msra.mxu0 0.0
    %1544 = vmatpush.msra.mxu0 %v192
    %1545 = vmatpush.msra.mxu0 %v191
    %1546 = vmatpush.msra.mxu0 %v190
    %1547 = vmatpush.msra.mxu0 %v189
    %1548 = vmatmul.f32.gmra.mxu0 %v1530
    %v1549 = vpop.f32.mrf.mxu0
    %v1550 = vadd.f32 %v1464, %v1549
    %1551 = vdwg.mxu0
    %v1552 = vadd.f32 %v1461, %v1550
    %v1553 = vxor.u32 %v1552, 2147483648
    %v1554 = vmul.f32 %v1553, 1.442695
    %v1555 = vpow.pop %v1554
    %v1556 = vadd.f32 %v1555, 1.0
    %v1557 = vrcp.pop %v1556
    %v1558 = vmul.f32 %v1556, %v1557
    %v1559 = vsub.f32 1.0, %v1558
    %v1560 = vmul.f32 %v1557, %v1559
    %v1561 = vadd.f32 %v1557, %v1560
    %vm1562 = vweird.f32 %v1556
    %vm1563 = vweird.f32 %v1557
    %vm1564 = vmor %vm1562, %vm1563
    %v1565 = vsel %vm1564, %v1557, %v1561
    %v1566 = vand.u32 2147483647, %v1556
    %vm1567 = vcmp.eq.f32.partialorder %v1566, 8.507059e+37
    %v1568 = vand.u32 %v1556, 2147483648
    %v1569 = vor.u32 1.1754944e-38, %v1568
    %v1570 = vsel %vm1567, %v1569, %v1565
    %v1571 = vmul.f32 1.0, %v1570
    %1573 = vrot.lane.b32.xlu0 %v1550, 64
    %v1574 = vpop.permute.xlu0 %1573
    %v1576 = vmul.f32 %v1571, %v1574
    %1578 = vrot.lane.b32.xlu0 %v1576, 64
    %v1579 = vpop.permute.xlu0 %1578
    %v1581 = vadd.f32 %v1461, %v1579
    %v1582 = vtanh.pop %v1581
    %v1583 = vsub.f32 1.0, %v1571
    %1585 = vrot.lane.b32.xlu0 %v1582, 96
    %v1586 = vpop.permute.xlu0 %1585
    %v1588 = vmul.f32 %v1583, %v1586
    %v1589 = vmul.f32 %v1571, %v1526
    %v1590 = vadd.f32 %v1588, %v1589
    %1592 = vrot.lane.b32.xlu0 %v1590, 96
    %v1593 = vpop.permute.xlu0 %1592
    %v1594 = vsel %vm1440, %v1593, 0
    %1596 = vmatpush.msra.mxu0 0.0
    %1597 = vmatpush.msra.mxu0 0.0
    %1598 = vmatpush.msra.mxu0 0.0
    %1599 = vmatpush.msra.mxu0 0.0
    %1600 = vmatpush.msra.mxu0 0.0
    %1601 = vmatpush.msra.mxu0 0.0
    %1602 = vmatpush.msra.mxu0 0.0
    %1603 = vmatpush.msra.mxu0 0.0
    %1604 = vmatpush.msra.mxu0 0.0
    %1605 = vmatpush.msra.mxu0 0.0
    %1606 = vmatpush.msra.mxu0 0.0
    %1607 = vmatpush.msra.mxu0 0.0
    %1608 = vmatpush.msra.mxu0 %v192
    %1609 = vmatpush.msra.mxu0 %v191
    %1610 = vmatpush.msra.mxu0 %v190
    %1611 = vmatpush.msra.mxu0 %v189
    %1612 = vmatmul.f32.gmra.mxu0 %v1594
    %v1613 = vpop.f32.mrf.mxu0
    %v1614 = vadd.f32 %v1464, %v1613
    %1615 = vdwg.mxu0
    %v1616 = vadd.f32 %v1461, %v1614
    %v1617 = vxor.u32 %v1616, 2147483648
    %v1618 = vmul.f32 %v1617, 1.442695
    %v1619 = vpow.pop %v1618
    %v1620 = vadd.f32 %v1619, 1.0
    %v1621 = vrcp.pop %v1620
    %v1622 = vmul.f32 %v1620, %v1621
    %v1623 = vsub.f32 1.0, %v1622
    %v1624 = vmul.f32 %v1621, %v1623
    %v1625 = vadd.f32 %v1621, %v1624
    %vm1626 = vweird.f32 %v1620
    %vm1627 = vweird.f32 %v1621
    %vm1628 = vmor %vm1626, %vm1627
    %v1629 = vsel %vm1628, %v1621, %v1625
    %v1630 = vand.u32 2147483647, %v1620
    %vm1631 = vcmp.eq.f32.partialorder %v1630, 8.507059e+37
    %v1632 = vand.u32 %v1620, 2147483648
    %v1633 = vor.u32 1.1754944e-38, %v1632
    %v1634 = vsel %vm1631, %v1633, %v1629
    %v1635 = vmul.f32 1.0, %v1634
    %1637 = vrot.lane.b32.xlu0 %v1614, 64
    %v1638 = vpop.permute.xlu0 %1637
    %v1640 = vmul.f32 %v1635, %v1638
    %1642 = vrot.lane.b32.xlu0 %v1640, 64
    %v1643 = vpop.permute.xlu0 %1642
    %v1645 = vadd.f32 %v1461, %v1643
    %v1646 = vtanh.pop %v1645
    %v1647 = vsub.f32 1.0, %v1635
    %1649 = vrot.lane.b32.xlu0 %v1646, 96
    %v1650 = vpop.permute.xlu0 %1649
    %v1652 = vmul.f32 %v1647, %v1650
    %v1653 = vmul.f32 %v1635, %v1590
    %v1654 = vadd.f32 %v1652, %v1653
    %1656 = vrot.lane.b32.xlu0 %v1654, 96
    %v1657 = vpop.permute.xlu0 %1656
    %v1658 = vsel %vm1440, %v1657, 0
    %1660 = vmatpush.msra.mxu0 0.0
    %1661 = vmatpush.msra.mxu0 0.0
    %1662 = vmatpush.msra.mxu0 0.0
    %1663 = vmatpush.msra.mxu0 0.0
    %1664 = vmatpush.msra.mxu0 0.0
    %1665 = vmatpush.msra.mxu0 0.0
    %1666 = vmatpush.msra.mxu0 0.0
    %1667 = vmatpush.msra.mxu0 0.0
    %1668 = vmatpush.msra.mxu0 0.0
    %1669 = vmatpush.msra.mxu0 0.0
    %1670 = vmatpush.msra.mxu0 0.0
    %1671 = vmatpush.msra.mxu0 0.0
    %1672 = vmatpush.msra.mxu0 %v192
    %1673 = vmatpush.msra.mxu0 %v191
    %1674 = vmatpush.msra.mxu0 %v190
    %1675 = vmatpush.msra.mxu0 %v189
    %1676 = vmatmul.f32.gmra.mxu0 %v1658
    %v1677 = vpop.f32.mrf.mxu0
    %v1678 = vadd.f32 %v1464, %v1677
    %1679 = vdwg.mxu0
    %v1680 = vadd.f32 %v1461, %v1678
    %v1681 = vxor.u32 %v1680, 2147483648
    %v1682 = vmul.f32 %v1681, 1.442695
    %v1683 = vpow.pop %v1682
    %v1684 = vadd.f32 %v1683, 1.0
    %v1685 = vrcp.pop %v1684
    %v1686 = vmul.f32 %v1684, %v1685
    %v1687 = vsub.f32 1.0, %v1686
    %v1688 = vmul.f32 %v1685, %v1687
    %v1689 = vadd.f32 %v1685, %v1688
    %vm1690 = vweird.f32 %v1684
    %vm1691 = vweird.f32 %v1685
    %vm1692 = vmor %vm1690, %vm1691
    %v1693 = vsel %vm1692, %v1685, %v1689
    %v1694 = vand.u32 2147483647, %v1684
    %vm1695 = vcmp.eq.f32.partialorder %v1694, 8.507059e+37
    %v1696 = vand.u32 %v1684, 2147483648
    %v1697 = vor.u32 1.1754944e-38, %v1696
    %v1698 = vsel %vm1695, %v1697, %v1693
    %v1699 = vmul.f32 1.0, %v1698
    %1701 = vrot.lane.b32.xlu0 %v1678, 64
    %v1702 = vpop.permute.xlu0 %1701
    %v1704 = vmul.f32 %v1699, %v1702
    %1706 = vrot.lane.b32.xlu0 %v1704, 64
    %v1707 = vpop.permute.xlu0 %1706
    %v1709 = vadd.f32 %v1461, %v1707
    %v1710 = vtanh.pop %v1709
    %v1711 = vsub.f32 1.0, %v1699
    %1713 = vrot.lane.b32.xlu0 %v1710, 96
    %v1714 = vpop.permute.xlu0 %1713
    %v1716 = vmul.f32 %v1711, %v1714
    %v1717 = vmul.f32 %v1699, %v1654
    %v1718 = vadd.f32 %v1716, %v1717
    %v1719 = vrot.slane %v1590, 6
    %v1721 = vrot.slane %v1654, 4
    %v1724 = vrot.slane %v1718, 2
    %vm1726 = vcmask 1041408
    %v1727 = vsel %vm1726, %v1526, %v1719
    %vm1728 = vcmask 1043456
    %v1729 = vsel %vm1728, %v1727, %v1721
    %vm1730 = vcmask 1045504
    %v1731 = vsel %vm1730, %v1729, %v1724
    %v1733 = vperm.slane %v199, 0
    %1736 = vrot.lane.b32.xlu0 %v1731, 96
    %v1737 = vpop.permute.xlu0 %1736
    %v1738 = vsel %vm1440, %v1737, 0
    %1740 = vmatpush.msra.mxu0 0.0
    %1741 = vmatpush.msra.mxu0 0.0
    %1742 = vmatpush.msra.mxu0 0.0
    %1743 = vmatpush.msra.mxu0 0.0
    %1744 = vmatpush.msra.mxu0 0.0
    %1745 = vmatpush.msra.mxu0 0.0
    %1746 = vmatpush.msra.mxu0 0.0
    %1747 = vmatpush.msra.mxu0 0.0
    %1748 = vmatpush.msra.mxu0 0.0
    %1749 = vmatpush.msra.mxu0 0.0
    %1750 = vmatpush.msra.mxu0 0.0
    %1751 = vmatpush.msra.mxu0 0.0
    %1752 = vmatpush.msra.mxu0 %v198
    %1753 = vmatpush.msra.mxu0 %v197
    %1754 = vmatpush.msra.mxu0 %v196
    %1755 = vmatpush.msra.mxu0 %v195
    %1756 = vmatmul.f32.gmra.mxu0 %v1738
    %v1757 = vpop.f32.mrf.mxu0
    %v1758 = vadd.f32 %v1733, %v1757
    %1759 = vdwg.mxu0
    %v1761 = vrot.slane %v1758, 1
    %vm1763 = vcmask 73728
    %1764 = vst.msk [vmem:[#allocation17] sm:$0x1] %vm1763, %v1758
    %1765 = vst.msk [vmem:[#allocation17 + $0x4] sm:$0x1] %vm1763, %v1761
    %1766 = vst [vmem:[#allocation1] sm:$0xff] %v1758
    %s1767 = scalar_lea.vmem [#allocation1], 2
    %v1768 = vld [vmem:[%s1767] ss:$9 sm:$0xff]
    %s1769 = scalar_lea.vmem [#allocation1], 3
    %v1770 = vld [vmem:[%s1769] ss:$9 sm:$0xff]
    %1773 = vst.msk [vmem:[#allocation17 + $0x1] sm:$0x1] %vm1763, %v1768
    %1774 = vst.msk [vmem:[#allocation17 + $0x5] sm:$0x1] %vm1763, %v1770
    %1775 = vst [vmem:[#allocation1] sm:$0xff] %v1758
    %s1776 = scalar_lea.vmem [#allocation1], 4
    %v1777 = vld [vmem:[%s1776] ss:$9 sm:$0xff]
    %s1778 = scalar_lea.vmem [#allocation1], 5
    %v1779 = vld [vmem:[%s1778] ss:$9 sm:$0xff]
    %1782 = vst.msk [vmem:[#allocation17 + $0x2] sm:$0x1] %vm1763, %v1777
    %1783 = vst.msk [vmem:[#allocation17 + $0x6] sm:$0x1] %vm1763, %v1779
    %1784 = vst [vmem:[#allocation1] sm:$0xff] %v1758
    %s1785 = scalar_lea.vmem [#allocation1], 6
    %v1786 = vld [vmem:[%s1785] ss:$9 sm:$0xff]
    %s1787 = scalar_lea.vmem [#allocation1], 7
    %v1788 = vld [vmem:[%s1787] ss:$9 sm:$0xff]
    %1791 = vst.msk [vmem:[#allocation17 + $0x3] sm:$0x1] %vm1763, %v1786
    %1792 = vst.msk [vmem:[#allocation17 + $0x7] sm:$0x1] %vm1763, %v1788
    // Predicated region
    $region98: #{subsampling_attention_forward.1} parent=1 // pred_check
      _
    $region99: #{subsampling_attention_forward.1} parent=1 // pred_check_branch
      %1794 = sbr.rel (0) target = $region101
    $region100: #{subsampling_attention_forward.1} parent=1 // pred_region
      %1796 = vsyncadd [#allocation4], 0
      %s1797 = sshll.u32 [#allocation17], 4
      %s1798 = int_to_ptr.vmem [resolvable:$true] %s1797
      %s1799 = sshll.u32 %s15, 4
      %s1800 = int_to_ptr.hbm [resolvable:$true] %s1799
      %1805 = dma.vmem_to_hbm [thread:$0]  %s1798, 128, %s1800, [#allocation4], 64, 64, 4
    $region101: #{subsampling_attention_forward.1} parent=1 // pred_fallthru
      _
    // Predicated region
    $region102: #{subsampling_attention_forward.1} parent=1 // pred_check
      _
    $region103: #{subsampling_attention_forward.1} parent=1 // pred_check_branch
      %1807 = sbr.rel (0) target = $region105
    $region104: #{subsampling_attention_forward.1} parent=1 // pred_region
      %1809 = dma.done [#allocation4], 128
    $region105: #{subsampling_attention_forward.1} parent=1 // pred_fallthru
      _
    %1810 = vsyncpa [#allocation3], 1
    %1811 = vsyncpa [#allocation6], 1
    %1812 = vsyncpa [#allocation9], 1
    %1813 = vsyncpa [#allocation12], 1
    %1814 = vsyncpa [#allocation15], 1
    %1815 = vsyncpa [#allocation4], 1

</llo_original>
